<compile_context>
chip_gen: v7x
topology: tpu7x:2x2x1
jax: 0.10.0
libtpu: 0.0.40
codegen_flags: <defaults>
</compile_context>

<pallas_src>
import functools
import math

import jax
import jax.numpy as jnp
from jax.experimental import pallas as pl
from jax.experimental.pallas import tpu as pltpu


def _critic_kernel(x_ref, adj_ref, act_ref, w_ref, p_ref, q_ref, *, obs, act, f1, f2):
    eps = jnp.float32(1e-5)
    slope = jnp.float32(0.2)

    bc, n, _ = x_ref.shape
    rows = bc * n

    # ---- unpack coalesced parameters (static slices, vreg-only work) ----
    W = w_ref[...]                                   # (obs + f1 + act + f1, f1)
    w_gat = W[0:obs, :]                              # (obs, f1)
    w1_g = W[obs:obs + f1, :]                        # (f1, f1)
    w1_a = W[obs + f1:obs + f1 + act, :]             # (act, f1)
    w2 = W[obs + f1 + act:, 0:f2]                    # (f1, f2)

    P = p_ref[...]                                   # (12, f_pad)
    b_lin = P[0:1, 0:f1]
    att = P[1:2, 0:f1]
    b_out = P[2:3, 0:f1]
    g1_g = P[3:4, 0:f1]
    bt1_g = P[4:5, 0:f1]
    g1_a = P[5:6, 0:act]
    bt1_a = P[6:7, 0:act]
    g2 = P[7:8, 0:f1]
    bt2 = P[8:9, 0:f1]
    b2 = P[9:10, 0:f2]
    w3 = P[10:11, 0:f2]
    b3 = P[11:12, 0:1]

    # ---- GATv2 shared linear, stacked over all graphs in this chunk (one MXU pass) ----
    x2 = x_ref[...].reshape(rows, obs)
    h2d = jnp.dot(x2, w_gat, preferred_element_type=jnp.float32) + b_lin   # (rows, f1)
    h = h2d.reshape(bc, n, f1)

    # ---- attention logits per graph: e[b,i,j] = att . leaky_relu(h_i + h_j) ----
    # dense (bc, n, n, f1) intermediate is a handful of vregs at n=8, f1=12
    z = h[:, :, None, :] + h[:, None, :, :]                  # (bc, n, n, f1)
    z = jnp.where(z > 0, z, slope * z)                       # leaky_relu(0.2)
    e = jnp.sum(z * att.reshape(1, 1, 1, f1), axis=-1)       # (bc, n, n)

    # masked softmax over source j (self loops guarantee >= 1 unmasked entry per row)
    adj = adj_ref[...]                                        # (bc, n, n), {0,1}
    bias = (adj - 1.0) * jnp.float32(1e30)                    # 0 on edges, -1e30 off
    logits = e + bias
    m = jnp.max(logits, axis=2, keepdims=True)
    p = jnp.exp(logits - m) * adj                             # exact zeros off-graph
    denom = jnp.sum(p, axis=2, keepdims=True)                 # >= 1 by construction
    alpha = p * pl.reciprocal(denom, approx=True)             # EUP; ~1e-3 rel error

    gat = jnp.einsum("bij,bjf->bif", alpha, h,
                     preferred_element_type=jnp.float32) + b_out   # (bc, n, f1)

    # ---- bn1 (training-mode per-graph node statistics) on both feature groups ----
    mu_g = jnp.mean(gat, axis=1, keepdims=True)
    var_g = jnp.mean(jnp.square(gat - mu_g), axis=1, keepdims=True)   # biased var
    gat_n = (gat - mu_g) * jax.lax.rsqrt(var_g + eps) * g1_g + bt1_g

    a3 = act_ref[...]                                          # (bc, n, act)
    mu_a = jnp.mean(a3, axis=1, keepdims=True)
    var_a = jnp.mean(jnp.square(a3 - mu_a), axis=1, keepdims=True)
    act_n = (a3 - mu_a) * jax.lax.rsqrt(var_a + eps) * g1_a + bt1_a

    # ---- fc1 (bias=False) on cat([gat_n, act_n]) == sum of two stacked matmuls ----
    h1 = (jnp.dot(gat_n.reshape(rows, f1), w1_g, preferred_element_type=jnp.float32)
          + jnp.dot(act_n.reshape(rows, act), w1_a, preferred_element_type=jnp.float32))
    h1 = jnp.maximum(h1, 0.0).reshape(bc, n, f1)               # relu(fc1(bn1(x)))

    # ---- bn2 -> fc2 -> relu ----
    mu2 = jnp.mean(h1, axis=1, keepdims=True)
    var2 = jnp.mean(jnp.square(h1 - mu2), axis=1, keepdims=True)
    h1n = (h1 - mu2) * jax.lax.rsqrt(var2 + eps) * g2 + bt2
    h2 = jnp.dot(h1n.reshape(rows, f1), w2, preferred_element_type=jnp.float32) + b2
    h2 = jnp.maximum(h2, 0.0).reshape(bc, n, f2)               # relu(fc2(bn2(x)))

    # ---- fc3 as VPU multiply + lane reduce (f2 -> 1); lane-dense (bc, n) store ----
    q = jnp.sum(h2 * w3.reshape(1, 1, f2), axis=-1) + b3       # (bc, n)
    q_ref[...] = q[None]                                       # (1, bc, n)


def pack_params(raw, obs, act, f1, f2):
    """Coalesce the per-layer parameters into 2 kernel operands."""
    f_pad = max(f1, act, f2, 1)

    def row(v, width):
        r = jnp.zeros((1, f_pad), jnp.float32)
        return r.at[0, :width].set(jnp.asarray(v, jnp.float32).reshape(-1))

    pvec = jnp.concatenate(
        [
            row(raw["b_gat_lin"], f1),   # 0
            row(raw["att"], f1),         # 1
            row(raw["b_gat_out"], f1),   # 2
            row(raw["gamma1_g"], f1),    # 3
            row(raw["beta1_g"], f1),     # 4
            row(raw["gamma1_a"], act),   # 5
            row(raw["beta1_a"], act),    # 6
            row(raw["gamma2"], f1),      # 7
            row(raw["beta2"], f1),       # 8
            row(raw["b2"], f2),          # 9
            row(raw["w3_row"], f2),      # 10
            row(raw["b3"], 1),           # 11
        ],
        axis=0,
    )                                                   # (12, f_pad)

    w2p = jnp.zeros((f1, f1), jnp.float32).at[:, :f2].set(raw["w2"])
    wmat = jnp.concatenate(
        [raw["w_gat"], raw["w1_g"], raw["w1_a"], w2p], axis=0
    )                                                   # (obs + f1 + act + f1, f1)
    return wmat, pvec


def critic_forward(x, adj, action, params):
    """x: (B, N, OBS), adj: (B, N, N) dense adjacency adj[target, source] WITH self
    loops, action: (B, N, ACT). Returns q: (B, N, 1)."""
    B, N, obs = x.shape
    act = action.shape[-1]
    f1 = (obs + act) // 2        # fc1_units, per the module definition
    f2 = f1 // 2                 # fc2_units
    wmat, pvec = params["wmat"], params["pvec"]

    # 2 grid steps (B/2 graphs each) so v7x can split the batch over its 2 TCs;
    # on v5e/v6e this costs only one extra ~0.35us step vs. a fully fused call.
    n_steps = 2 if (B >= 2 and B % 2 == 0) else 1
    bc = B // n_steps

    kernel = functools.partial(_critic_kernel, obs=obs, act=act, f1=f1, f2=f2)

    q = pl.pallas_call(
        kernel,
        out_shape=jax.ShapeDtypeStruct((n_steps, bc, N), jnp.float32),
        grid=(n_steps,),
        in_specs=[
            pl.BlockSpec((bc, N, obs), lambda s: (s, 0, 0)),
            pl.BlockSpec((bc, N, N), lambda s: (s, 0, 0)),
            pl.BlockSpec((bc, N, act), lambda s: (s, 0, 0)),
            pl.BlockSpec(wmat.shape, lambda s: (0, 0)),   # resident across steps
            pl.BlockSpec(pvec.shape, lambda s: (0, 0)),   # resident across steps
        ],
        out_specs=pl.BlockSpec((1, bc, N), lambda s: (s, 0, 0)),
        compiler_params=pltpu.CompilerParams(
            dimension_semantics=("parallel",),
        ),
    )(x, adj, action, wmat, pvec)

    return q.reshape(B, N, 1)


def make_params(key, obs, act, f1, f2):
    ks = jax.random.split(key, 8)

    def u(k, shape, lim):
        return jax.random.uniform(k, shape, jnp.float32, -lim, lim)

    raw = {
        # GATv2Conv: shared lin (weight + bias), attention vector, output bias
        "w_gat":     u(ks[0], (obs, f1), 1.0 / math.sqrt(obs)),
        "b_gat_lin": jnp.zeros((1, f1), jnp.float32),
        "att":       u(ks[1], (1, f1), 1.0 / math.sqrt(f1)),
        "b_gat_out": jnp.zeros((1, f1), jnp.float32),
        # bn1 over (f1 + act) features, split into GAT / action groups
        "gamma1_g":  jnp.ones((1, f1), jnp.float32),
        "beta1_g":   jnp.zeros((1, f1), jnp.float32),
        "gamma1_a":  jnp.ones((1, act), jnp.float32),
        "beta1_a":   jnp.zeros((1, act), jnp.float32),
        # fc1: Linear(f1 + act, f1, bias=False), split along the input dim
        "w1_g":      u(ks[2], (f1, f1), 1.0 / math.sqrt(f1)),
        "w1_a":      u(ks[3], (act, f1), 1.0 / math.sqrt(f1)),
        # bn2 over f1 features
        "gamma2":    jnp.ones((1, f1), jnp.float32),
        "beta2":     jnp.zeros((1, f1), jnp.float32),
        # fc2 / fc3 (fc3 weight stored as a (1, f2) row for the VPU reduce)
        "w2":        u(ks[4], (f1, f2), 1.0 / math.sqrt(f2)),
        "b2":        u(ks[5], (1, f2), 1.0 / math.sqrt(f2)),
        "w3_row":    u(ks[6], (1, f2), 1.0),
        "b3":        u(ks[7], (1, 1), 1.0),
    }
    wmat, pvec = pack_params(raw, obs, act, f1, f2)
    return {"wmat": wmat, "pvec": pvec}


if __name__ == "__main__":
    key = jax.random.PRNGKey(0)
    OBS, ACT, N, B = 16, 8, 8, 4             # observation_size, action_size, nodes, batch
    F1 = (OBS + ACT) // 2                    # fc1_units = 12
    F2 = F1 // 2                             # fc2_units = 6

    k_x, k_a, k_p = jax.random.split(key, 3)
    x = jax.random.normal(k_x, (B, N, OBS), jnp.float32)        # B copies of data.x
    action = jax.random.normal(k_a, (B, N, ACT), jnp.float32)   # B action sets

    # data.edge_index: bidirectional ring graph -> dense adjacency adj[target, source];
    # GATv2Conv adds self loops by default (required so each softmax row is nonempty).
    src = jnp.concatenate([jnp.arange(N), (jnp.arange(N) + 1) % N])
    dst = jnp.concatenate([(jnp.arange(N) + 1) % N, jnp.arange(N)])
    adj1 = jnp.zeros((N, N), jnp.float32).at[dst, src].set(1.0)
    adj1 = adj1.at[jnp.arange(N), jnp.arange(N)].set(1.0)
    adj = jnp.broadcast_to(adj1, (B, N, N))

    params = make_params(k_p, OBS, ACT, F1, F2)

    q = jax.jit(critic_forward)(x, adj, action, params)
    jax.block_until_ready(q)
    assert q.shape == (B, N, 1)
    assert bool(jnp.all(jnp.isfinite(q)))
    print("KERNEL_OK")
</pallas_src>

<mosaic_0001>
module attributes {stable_mosaic.version = 11 : i64} {
  func.func @_critic_kernel(%arg0: i32, %arg1: memref<2x8x16xf32, #tpu.memory_space<vmem>>, %arg2: memref<2x8x8xf32, #tpu.memory_space<vmem>>, %arg3: memref<2x8x8xf32, #tpu.memory_space<vmem>>, %arg4: memref<48x12xf32, #tpu.memory_space<vmem>>, %arg5: memref<12x12xf32, #tpu.memory_space<vmem>>, %arg6: memref<1x2x8xf32, #tpu.memory_space<vmem>>) attributes {dimension_semantics = [#tpu.dimension_semantics<parallel>], iteration_bounds = array<i64: 2>, scalar_prefetch = 0 : i64, scratch_operands = 0 : i64, tpu.core_type = #tpu.core_type<tc>, window_params = [{transform_indices = @transform_0, window_bounds = array<i64: 2, 8, 16>}, {transform_indices = @transform_1, window_bounds = array<i64: 2, 8, 8>}, {transform_indices = @transform_2, window_bounds = array<i64: 2, 8, 8>}, {pipeline_mode = #tpu.pipeline_mode<synchronous>, transform_indices = @transform_3, window_bounds = array<i64: 48, 12>}, {pipeline_mode = #tpu.pipeline_mode<synchronous>, transform_indices = @transform_4, window_bounds = array<i64: 12, 12>}, {transform_indices = @transform_5, window_bounds = array<i64: 1, 2, 8>}]} {
    %c0 = arith.constant 0 : index
    %c0_0 = arith.constant 0 : index
    %0 = vector.load %arg4[%c0, %c0_0] : memref<48x12xf32, #tpu.memory_space<vmem>>, vector<48x12xf32>
    %1 = vector.extract_strided_slice %0 {offsets = [0, 0], sizes = [16, 12], strides = [1, 1]} : vector<48x12xf32> to vector<16x12xf32>
    %2 = vector.extract_strided_slice %0 {offsets = [16, 0], sizes = [12, 12], strides = [1, 1]} : vector<48x12xf32> to vector<12x12xf32>
    %3 = vector.extract_strided_slice %0 {offsets = [28, 0], sizes = [8, 12], strides = [1, 1]} : vector<48x12xf32> to vector<8x12xf32>
    %4 = vector.extract_strided_slice %0 {offsets = [36, 0], sizes = [12, 6], strides = [1, 1]} : vector<48x12xf32> to vector<12x6xf32>
    %c0_1 = arith.constant 0 : index
    %c0_2 = arith.constant 0 : index
    %5 = vector.load %arg5[%c0_1, %c0_2] : memref<12x12xf32, #tpu.memory_space<vmem>>, vector<12x12xf32>
    %6 = vector.extract_strided_slice %5 {offsets = [0, 0], sizes = [1, 12], strides = [1, 1]} : vector<12x12xf32> to vector<1x12xf32>
    %7 = vector.extract_strided_slice %5 {offsets = [1, 0], sizes = [1, 12], strides = [1, 1]} : vector<12x12xf32> to vector<1x12xf32>
    %8 = vector.extract_strided_slice %5 {offsets = [2, 0], sizes = [1, 12], strides = [1, 1]} : vector<12x12xf32> to vector<1x12xf32>
    %9 = vector.extract_strided_slice %5 {offsets = [3, 0], sizes = [1, 12], strides = [1, 1]} : vector<12x12xf32> to vector<1x12xf32>
    %10 = vector.extract_strided_slice %5 {offsets = [4, 0], sizes = [1, 12], strides = [1, 1]} : vector<12x12xf32> to vector<1x12xf32>
    %11 = vector.extract_strided_slice %5 {offsets = [5, 0], sizes = [1, 8], strides = [1, 1]} : vector<12x12xf32> to vector<1x8xf32>
    %12 = vector.extract_strided_slice %5 {offsets = [6, 0], sizes = [1, 8], strides = [1, 1]} : vector<12x12xf32> to vector<1x8xf32>
    %13 = vector.extract_strided_slice %5 {offsets = [7, 0], sizes = [1, 12], strides = [1, 1]} : vector<12x12xf32> to vector<1x12xf32>
    %14 = vector.extract_strided_slice %5 {offsets = [8, 0], sizes = [1, 12], strides = [1, 1]} : vector<12x12xf32> to vector<1x12xf32>
    %15 = vector.extract_strided_slice %5 {offsets = [9, 0], sizes = [1, 6], strides = [1, 1]} : vector<12x12xf32> to vector<1x6xf32>
    %16 = vector.extract_strided_slice %5 {offsets = [10, 0], sizes = [1, 6], strides = [1, 1]} : vector<12x12xf32> to vector<1x6xf32>
    %17 = vector.extract_strided_slice %5 {offsets = [11, 0], sizes = [1, 1], strides = [1, 1]} : vector<12x12xf32> to vector<1x1xf32>
    %c0_3 = arith.constant 0 : index
    %c0_4 = arith.constant 0 : index
    %c0_5 = arith.constant 0 : index
    %18 = vector.load %arg1[%c0_3, %c0_4, %c0_5] : memref<2x8x16xf32, #tpu.memory_space<vmem>>, vector<2x8x16xf32>
    %19 = vector.shape_cast %18 : vector<2x8x16xf32> to vector<16x16xf32>
    %cst = arith.constant dense<0.000000e+00> : vector<16x12xf32>
    %20 = tpu.matmul %19, %1, %cst {dimension_numbers = #tpu.dot_dimension_numbers<[1], [0], [0], [1], [0, 0, 1, 1], [], []>} : vector<16x16xf32>, vector<16x12xf32>, vector<16x12xf32> -> vector<16x12xf32>
    %21 = vector.broadcast %6 : vector<1x12xf32> to vector<16x12xf32>
    %22 = arith.addf %20, %21 : vector<16x12xf32>
    %23 = vector.shape_cast %22 : vector<16x12xf32> to vector<2x8x12xf32>
    %24 = vector.shape_cast %23 : vector<2x8x12xf32> to vector<2x8x1x12xf32>
    %25 = vector.shape_cast %23 : vector<2x8x12xf32> to vector<2x1x8x12xf32>
    %26 = vector.broadcast %24 : vector<2x8x1x12xf32> to vector<2x8x8x12xf32>
    %27 = vector.broadcast %25 : vector<2x1x8x12xf32> to vector<2x8x8x12xf32>
    %28 = arith.addf %26, %27 : vector<2x8x8x12xf32>
    %cst_6 = arith.constant 0.000000e+00 : f32
    %29 = vector.broadcast %cst_6 : f32 to vector<2x8x8x12xf32>
    %30 = arith.cmpf ogt, %28, %29 : vector<2x8x8x12xf32>
    %cst_7 = arith.constant 2.000000e-01 : f32
    %31 = vector.broadcast %cst_7 : f32 to vector<2x8x8x12xf32>
    %32 = arith.mulf %31, %28 : vector<2x8x8x12xf32>
    %33 = arith.select %30, %28, %32 : vector<2x8x8x12xi1>, vector<2x8x8x12xf32>
    %34 = vector.shape_cast %7 : vector<1x12xf32> to vector<1x1x1x12xf32>
    %35 = vector.broadcast %34 : vector<1x1x1x12xf32> to vector<2x8x8x12xf32>
    %36 = arith.mulf %33, %35 : vector<2x8x8x12xf32>
    %cst_8 = arith.constant dense<0.000000e+00> : vector<2x8x8xf32>
    %37 = vector.multi_reduction <add>, %36, %cst_8 [3] : vector<2x8x8x12xf32> to vector<2x8x8xf32>
    %c0_9 = arith.constant 0 : index
    %c0_10 = arith.constant 0 : index
    %c0_11 = arith.constant 0 : index
    %38 = vector.load %arg2[%c0_9, %c0_10, %c0_11] : memref<2x8x8xf32, #tpu.memory_space<vmem>>, vector<2x8x8xf32>
    %cst_12 = arith.constant 1.000000e+00 : f32
    %39 = vector.broadcast %cst_12 : f32 to vector<2x8x8xf32>
    %40 = arith.subf %38, %39 : vector<2x8x8xf32>
    %cst_13 = arith.constant 1.000000e+30 : f32
    %41 = vector.broadcast %cst_13 : f32 to vector<2x8x8xf32>
    %42 = arith.mulf %40, %41 : vector<2x8x8xf32>
    %43 = arith.addf %37, %42 : vector<2x8x8xf32>
    %cst_14 = arith.constant dense<0xFF800000> : vector<2x8xf32>
    %44 = vector.multi_reduction <maximumf>, %43, %cst_14 [2] : vector<2x8x8xf32> to vector<2x8xf32>
    %45 = vector.shape_cast %44 : vector<2x8xf32> to vector<2x8x1xf32>
    %46 = vector.broadcast %45 : vector<2x8x1xf32> to vector<2x8x8xf32>
    %47 = arith.subf %43, %46 : vector<2x8x8xf32>
    %48 = math.exp %47 : vector<2x8x8xf32>
    %49 = arith.mulf %48, %38 : vector<2x8x8xf32>
    %cst_15 = arith.constant dense<0.000000e+00> : vector<2x8xf32>
    %50 = vector.multi_reduction <add>, %49, %cst_15 [2] : vector<2x8x8xf32> to vector<2x8xf32>
    %51 = vector.shape_cast %50 : vector<2x8xf32> to vector<2x8x1xf32>
    %52 = tpu.reciprocal %51 {approx = true} : vector<2x8x1xf32> -> vector<2x8x1xf32>
    %53 = vector.broadcast %52 : vector<2x8x1xf32> to vector<2x8x8xf32>
    %54 = arith.mulf %49, %53 : vector<2x8x8xf32>
    "tpu.trace_start"() <{level = 10 : i32, message = "bij,bjf->bif"}> : () -> ()
    %cst_16 = arith.constant dense<0.000000e+00> : vector<2x8x12xf32>
    %55 = tpu.matmul %54, %23, %cst_16 {dimension_numbers = #tpu.dot_dimension_numbers<[2], [1], [1], [2], [0, 0, 0, 1, 1, 2], [0], [0]>} : vector<2x8x8xf32>, vector<2x8x12xf32>, vector<2x8x12xf32> -> vector<2x8x12xf32>
    "tpu.trace_stop"() : () -> ()
    %56 = vector.shape_cast %8 : vector<1x12xf32> to vector<1x1x12xf32>
    %57 = vector.broadcast %56 : vector<1x1x12xf32> to vector<2x8x12xf32>
    %58 = arith.addf %55, %57 : vector<2x8x12xf32>
    %cst_17 = arith.constant dense<0.000000e+00> : vector<2x12xf32>
    %59 = vector.multi_reduction <add>, %58, %cst_17 [1] : vector<2x8x12xf32> to vector<2x12xf32>
    %60 = vector.shape_cast %59 : vector<2x12xf32> to vector<2x1x12xf32>
    %cst_18 = arith.constant 8.000000e+00 : f32
    %61 = vector.broadcast %cst_18 : f32 to vector<2x1x12xf32>
    %62 = arith.divf %60, %61 : vector<2x1x12xf32>
    %63 = vector.broadcast %62 : vector<2x1x12xf32> to vector<2x8x12xf32>
    %64 = arith.subf %58, %63 : vector<2x8x12xf32>
    %65 = arith.mulf %64, %64 : vector<2x8x12xf32>
    %cst_19 = arith.constant dense<0.000000e+00> : vector<2x12xf32>
    %66 = vector.multi_reduction <add>, %65, %cst_19 [1] : vector<2x8x12xf32> to vector<2x12xf32>
    %67 = vector.shape_cast %66 : vector<2x12xf32> to vector<2x1x12xf32>
    %cst_20 = arith.constant 8.000000e+00 : f32
    %68 = vector.broadcast %cst_20 : f32 to vector<2x1x12xf32>
    %69 = arith.divf %67, %68 : vector<2x1x12xf32>
    %70 = vector.broadcast %62 : vector<2x1x12xf32> to vector<2x8x12xf32>
    %71 = arith.subf %58, %70 : vector<2x8x12xf32>
    %cst_21 = arith.constant 9.99999974E-6 : f32
    %72 = vector.broadcast %cst_21 : f32 to vector<2x1x12xf32>
    %73 = arith.addf %69, %72 : vector<2x1x12xf32>
    %74 = math.rsqrt %73 : vector<2x1x12xf32>
    %75 = vector.broadcast %74 : vector<2x1x12xf32> to vector<2x8x12xf32>
    %76 = arith.mulf %71, %75 : vector<2x8x12xf32>
    %77 = vector.shape_cast %9 : vector<1x12xf32> to vector<1x1x12xf32>
    %78 = vector.broadcast %77 : vector<1x1x12xf32> to vector<2x8x12xf32>
    %79 = arith.mulf %76, %78 : vector<2x8x12xf32>
    %80 = vector.shape_cast %10 : vector<1x12xf32> to vector<1x1x12xf32>
    %81 = vector.broadcast %80 : vector<1x1x12xf32> to vector<2x8x12xf32>
    %82 = arith.addf %79, %81 : vector<2x8x12xf32>
    %c0_22 = arith.constant 0 : index
    %c0_23 = arith.constant 0 : index
    %c0_24 = arith.constant 0 : index
    %83 = vector.load %arg3[%c0_22, %c0_23, %c0_24] : memref<2x8x8xf32, #tpu.memory_space<vmem>>, vector<2x8x8xf32>
    %cst_25 = arith.constant dense<0.000000e+00> : vector<2x8xf32>
    %84 = vector.multi_reduction <add>, %83, %cst_25 [1] : vector<2x8x8xf32> to vector<2x8xf32>
    %85 = vector.shape_cast %84 : vector<2x8xf32> to vector<2x1x8xf32>
    %cst_26 = arith.constant 8.000000e+00 : f32
    %86 = vector.broadcast %cst_26 : f32 to vector<2x1x8xf32>
    %87 = arith.divf %85, %86 : vector<2x1x8xf32>
    %88 = vector.broadcast %87 : vector<2x1x8xf32> to vector<2x8x8xf32>
    %89 = arith.subf %83, %88 : vector<2x8x8xf32>
    %90 = arith.mulf %89, %89 : vector<2x8x8xf32>
    %cst_27 = arith.constant dense<0.000000e+00> : vector<2x8xf32>
    %91 = vector.multi_reduction <add>, %90, %cst_27 [1] : vector<2x8x8xf32> to vector<2x8xf32>
    %92 = vector.shape_cast %91 : vector<2x8xf32> to vector<2x1x8xf32>
    %cst_28 = arith.constant 8.000000e+00 : f32
    %93 = vector.broadcast %cst_28 : f32 to vector<2x1x8xf32>
    %94 = arith.divf %92, %93 : vector<2x1x8xf32>
    %95 = vector.broadcast %87 : vector<2x1x8xf32> to vector<2x8x8xf32>
    %96 = arith.subf %83, %95 : vector<2x8x8xf32>
    %cst_29 = arith.constant 9.99999974E-6 : f32
    %97 = vector.broadcast %cst_29 : f32 to vector<2x1x8xf32>
    %98 = arith.addf %94, %97 : vector<2x1x8xf32>
    %99 = math.rsqrt %98 : vector<2x1x8xf32>
    %100 = vector.broadcast %99 : vector<2x1x8xf32> to vector<2x8x8xf32>
    %101 = arith.mulf %96, %100 : vector<2x8x8xf32>
    %102 = vector.shape_cast %11 : vector<1x8xf32> to vector<1x1x8xf32>
    %103 = vector.broadcast %102 : vector<1x1x8xf32> to vector<2x8x8xf32>
    %104 = arith.mulf %101, %103 : vector<2x8x8xf32>
    %105 = vector.shape_cast %12 : vector<1x8xf32> to vector<1x1x8xf32>
    %106 = vector.broadcast %105 : vector<1x1x8xf32> to vector<2x8x8xf32>
    %107 = arith.addf %104, %106 : vector<2x8x8xf32>
    %108 = vector.shape_cast %82 : vector<2x8x12xf32> to vector<16x12xf32>
    %cst_30 = arith.constant dense<0.000000e+00> : vector<16x12xf32>
    %109 = tpu.matmul %108, %2, %cst_30 {dimension_numbers = #tpu.dot_dimension_numbers<[1], [0], [0], [1], [0, 0, 1, 1], [], []>} : vector<16x12xf32>, vector<12x12xf32>, vector<16x12xf32> -> vector<16x12xf32>
    %110 = vector.shape_cast %107 : vector<2x8x8xf32> to vector<16x8xf32>
    %cst_31 = arith.constant dense<0.000000e+00> : vector<16x12xf32>
    %111 = tpu.matmul %110, %3, %cst_31 {dimension_numbers = #tpu.dot_dimension_numbers<[1], [0], [0], [1], [0, 0, 1, 1], [], []>} : vector<16x8xf32>, vector<8x12xf32>, vector<16x12xf32> -> vector<16x12xf32>
    %112 = arith.addf %109, %111 : vector<16x12xf32>
    %cst_32 = arith.constant 0.000000e+00 : f32
    %113 = vector.broadcast %cst_32 : f32 to vector<16x12xf32>
    %114 = arith.maximumf %112, %113 : vector<16x12xf32>
    %115 = vector.shape_cast %114 : vector<16x12xf32> to vector<2x8x12xf32>
    %cst_33 = arith.constant dense<0.000000e+00> : vector<2x12xf32>
    %116 = vector.multi_reduction <add>, %115, %cst_33 [1] : vector<2x8x12xf32> to vector<2x12xf32>
    %117 = vector.shape_cast %116 : vector<2x12xf32> to vector<2x1x12xf32>
    %cst_34 = arith.constant 8.000000e+00 : f32
    %118 = vector.broadcast %cst_34 : f32 to vector<2x1x12xf32>
    %119 = arith.divf %117, %118 : vector<2x1x12xf32>
    %120 = vector.broadcast %119 : vector<2x1x12xf32> to vector<2x8x12xf32>
    %121 = arith.subf %115, %120 : vector<2x8x12xf32>
    %122 = arith.mulf %121, %121 : vector<2x8x12xf32>
    %cst_35 = arith.constant dense<0.000000e+00> : vector<2x12xf32>
    %123 = vector.multi_reduction <add>, %122, %cst_35 [1] : vector<2x8x12xf32> to vector<2x12xf32>
    %124 = vector.shape_cast %123 : vector<2x12xf32> to vector<2x1x12xf32>
    %cst_36 = arith.constant 8.000000e+00 : f32
    %125 = vector.broadcast %cst_36 : f32 to vector<2x1x12xf32>
    %126 = arith.divf %124, %125 : vector<2x1x12xf32>
    %127 = vector.broadcast %119 : vector<2x1x12xf32> to vector<2x8x12xf32>
    %128 = arith.subf %115, %127 : vector<2x8x12xf32>
    %cst_37 = arith.constant 9.99999974E-6 : f32
    %129 = vector.broadcast %cst_37 : f32 to vector<2x1x12xf32>
    %130 = arith.addf %126, %129 : vector<2x1x12xf32>
    %131 = math.rsqrt %130 : vector<2x1x12xf32>
    %132 = vector.broadcast %131 : vector<2x1x12xf32> to vector<2x8x12xf32>
    %133 = arith.mulf %128, %132 : vector<2x8x12xf32>
    %134 = vector.shape_cast %13 : vector<1x12xf32> to vector<1x1x12xf32>
    %135 = vector.broadcast %134 : vector<1x1x12xf32> to vector<2x8x12xf32>
    %136 = arith.mulf %133, %135 : vector<2x8x12xf32>
    %137 = vector.shape_cast %14 : vector<1x12xf32> to vector<1x1x12xf32>
    %138 = vector.broadcast %137 : vector<1x1x12xf32> to vector<2x8x12xf32>
    %139 = arith.addf %136, %138 : vector<2x8x12xf32>
    %140 = vector.shape_cast %139 : vector<2x8x12xf32> to vector<16x12xf32>
    %cst_38 = arith.constant dense<0.000000e+00> : vector<16x6xf32>
    %141 = tpu.matmul %140, %4, %cst_38 {dimension_numbers = #tpu.dot_dimension_numbers<[1], [0], [0], [1], [0, 0, 1, 1], [], []>} : vector<16x12xf32>, vector<12x6xf32>, vector<16x6xf32> -> vector<16x6xf32>
    %142 = vector.broadcast %15 : vector<1x6xf32> to vector<16x6xf32>
    %143 = arith.addf %141, %142 : vector<16x6xf32>
    %cst_39 = arith.constant 0.000000e+00 : f32
    %144 = vector.broadcast %cst_39 : f32 to vector<16x6xf32>
    %145 = arith.maximumf %143, %144 : vector<16x6xf32>
    %146 = vector.shape_cast %145 : vector<16x6xf32> to vector<2x8x6xf32>
    %147 = vector.shape_cast %16 : vector<1x6xf32> to vector<1x1x6xf32>
    %148 = vector.broadcast %147 : vector<1x1x6xf32> to vector<2x8x6xf32>
    %149 = arith.mulf %146, %148 : vector<2x8x6xf32>
    %cst_40 = arith.constant dense<0.000000e+00> : vector<2x8xf32>
    %150 = vector.multi_reduction <add>, %149, %cst_40 [2] : vector<2x8x6xf32> to vector<2x8xf32>
    %151 = vector.broadcast %17 : vector<1x1xf32> to vector<2x8xf32>
    %152 = arith.addf %150, %151 : vector<2x8xf32>
    %153 = vector.shape_cast %152 : vector<2x8xf32> to vector<1x2x8xf32>
    %c0_41 = arith.constant 0 : index
    %c0_42 = arith.constant 0 : index
    %c0_43 = arith.constant 0 : index
    %154 = vector.load %arg6[%c0_41, %c0_42, %c0_43] : memref<1x2x8xf32, #tpu.memory_space<vmem>>, vector<1x2x8xf32>
    tpu.vector_store %arg6[%c0_41, %c0_42, %c0_43], %153 {strides = array<i32>} : memref<1x2x8xf32, #tpu.memory_space<vmem>>, vector<1x2x8xf32>,
    return
  }
  func.func @transform_0(%arg0: i32) -> (i32, i32, i32) {
    %c0_i32 = arith.constant 0 : i32
    %c0_i32_0 = arith.constant 0 : i32
    %c0_i32_1 = arith.constant 0 : i32
    return %arg0, %c0_i32, %c0_i32_0 : i32, i32, i32
  }
  func.func @transform_1(%arg0: i32) -> (i32, i32, i32) {
    %c0_i32 = arith.constant 0 : i32
    %c0_i32_0 = arith.constant 0 : i32
    %c0_i32_1 = arith.constant 0 : i32
    return %arg0, %c0_i32, %c0_i32_0 : i32, i32, i32
  }
  func.func @transform_2(%arg0: i32) -> (i32, i32, i32) {
    %c0_i32 = arith.constant 0 : i32
    %c0_i32_0 = arith.constant 0 : i32
    %c0_i32_1 = arith.constant 0 : i32
    return %arg0, %c0_i32, %c0_i32_0 : i32, i32, i32
  }
  func.func @transform_3(%arg0: i32) -> (i32, i32) {
    %c0_i32 = arith.constant 0 : i32
    %c0_i32_0 = arith.constant 0 : i32
    %c0_i32_1 = arith.constant 0 : i32
    return %c0_i32, %c0_i32_0 : i32, i32
  }
  func.func @transform_4(%arg0: i32) -> (i32, i32) {
    %c0_i32 = arith.constant 0 : i32
    %c0_i32_0 = arith.constant 0 : i32
    %c0_i32_1 = arith.constant 0 : i32
    return %c0_i32, %c0_i32_0 : i32, i32
  }
  func.func @transform_5(%arg0: i32) -> (i32, i32, i32) {
    %c0_i32 = arith.constant 0 : i32
    %c0_i32_0 = arith.constant 0 : i32
    %c0_i32_1 = arith.constant 0 : i32
    return %arg0, %c0_i32, %c0_i32_0 : i32, i32, i32
  }
}

</mosaic_0001>

<llo_original>
// kernel: critic_forward.1
$region0: #{critic_forward.1}
  #allocation0 [shape = 'u32[]', space=smem, size = 0x4, offset = 0x4, fixed_abs, tag = 'smem constant byte address 0x4 - core index']
  #allocation1 [shape = 'u32[144,128]{1,0:T(1,128)}', space=vmem, size = 0x12000, scoped, tag = 'internal scratch']
  %s0 = inlined_call_operand.vmem [shape: f32[4,8,16], index: 0, kind: input, shape index: {}]
  %s1 = inlined_call_operand.vmem [shape: f32[4,8,8], index: 1, kind: input, shape index: {}]
  %s2 = inlined_call_operand.hbm [shape: f32[4,8,8], index: 2, kind: input, shape index: {}]
  %s3 = inlined_call_operand.vmem [shape: f32[48,12], index: 3, kind: input, shape index: {}]
  %s4 = inlined_call_operand.hbm [shape: f32[12,12], index: 4, kind: input, shape index: {}]
  %s5 = inlined_call_operand.hbm [shape: f32[2,2,8], index: 5, kind: output, shape index: {}]
  %s6 = sld [smem:[#allocation0]]
  $region61: #{critic_forward.1} parent=0
    _
  %s8 = ssub.s32 1, %s6
  %s9 = scalar_select 0, %s8, %s6
  $region1: #{critic_forward.1} parent=0
    #allocation2 [shape = 'u8[16384]{0}', space=vmem, size = 0x4000, scoped, tag = 'input window, operand 2']
    #allocation3 [shape = 's32[2]{0}', space=sflag, size = 0x8, scoped, tag = 'scoped memory for critic_forward.1']
    #allocation4 [shape = 's32[2]{0}', space=sflag, size = 0x8, scoped, tag = 'scoped memory for critic_forward.1']
    #allocation5 [shape = 'u8[8192]{0}', space=vmem, size = 0x2000, scoped, tag = 'input window, operand 4, single buffered']
    #allocation6 [shape = 's32[1]{0}', space=sflag, size = 0x4, scoped, tag = 'scoped memory for critic_forward.1']
    #allocation7 [shape = 'u8[2048]{0}', space=vmem, size = 0x800, scoped, tag = 'output window, operand 0']
    %10 = vsyncpa [#allocation3], 0
    %s11 = scalar_lea.sflag [#allocation3], 1
    %12 = vsyncpa %s11, 0
    %13 = vsyncpa [#allocation6], 0
    %14 = vsyncpa [#allocation4], 0
    %s15 = scalar_lea.sflag [#allocation4], 1
    %16 = vsyncpa %s15, 0
    loop: start=0, step=1, limit=4
    $region2: #{critic_forward.1} parent=1 // loop_pre_header
      _
    $region3: #{critic_forward.1} parent=1 // loop_header
      %s18 = sphi 0, %s22
      %p19 = scmp.ge.s32.totalorder %s18, 4
      %s28 = sphi 0, %s30
      %s31 = sphi 0, %s28
      %s32 = sphi 0, %s31
      %s48 = sphi 0, %s32
      %s54 = sphi 0, %s56
      %s57 = sphi 0, %s54
      %s58 = sphi 0, %s57
      %s74 = sphi 0, %s58
      %s80 = sphi 0, %s82
      %s83 = sphi 0, %s80
      %s84 = sphi 0, %s83
      %s100 = sphi 0, %s84
      %s104 = sphi 0, %s104
      %s106 = sphi 0, %s104
      %s107 = sphi 0, %s106
      %s121 = sphi 0, %s107
      %s125 = sphi 0, %s125
      %s127 = sphi 0, %s125
      %s128 = sphi 0, %s127
      %s142 = sphi 0, %s128
      %s148 = sphi 0, %s150
      %s151 = sphi 0, %s148
      %s152 = sphi 0, %s151
      %s168 = sphi 0, %s152
    $region4: #{critic_forward.1} parent=1 // loop_header_branch
      %21 = sbr.rel (%p19) target = $region8
    $region5: #{critic_forward.1} parent=1 // loop_body
      %s23 = ssub.s32 %s18, 1
      %s24 = ssub.s32 %s18, 2
      %s25 = sadd.s32 %s18, 1
      %s26 = ssub.s32 %s18, %s25
      %p27 = scmp.eq.s32.totalorder %s26, 0
      %s29 = sadd.s32 %s28, 1
      %s30 = scalar_select %p27, %s28, %s29
      %p33 = pneg %p27
      %p34 = scmp.eq.s32.totalorder %s18, 1
      %p35 = por %p33, %p34
      %p36 = scmp.ne.s32.totalorder %s28, %s31
      %p37 = scmp.eq.s32.totalorder %s18, 0
      %p38 = por %p36, %p37
      %p39 = scmp.ne.s32.totalorder %s28, %s31
      %p40 = scmp.eq.s32.totalorder %s23, 1
      %p41 = por %p39, %p40
      %p42 = scmp.ne.s32.totalorder %s31, %s32
      %p43 = scmp.eq.s32.totalorder %s23, 0
      %p44 = por %p42, %p43
      %p45 = scmp.ne.s32.totalorder %s31, %s32
      %p46 = scmp.eq.s32.totalorder %s24, 1
      %p47 = por %p45, %p46
      %p49 = scmp.ne.s32.totalorder %s32, %s48
      %p50 = scmp.eq.s32.totalorder %s24, 0
      %p51 = por %p49, %p50
      %s52 = ssub.s32 %s18, %s25
      %p53 = scmp.eq.s32.totalorder %s52, 0
      %s55 = sadd.s32 %s54, 1
      %s56 = scalar_select %p53, %s54, %s55
      %p59 = pneg %p53
      %p60 = scmp.eq.s32.totalorder %s18, 1
      %p61 = por %p59, %p60
      %p62 = scmp.ne.s32.totalorder %s54, %s57
      %p63 = scmp.eq.s32.totalorder %s18, 0
      %p64 = por %p62, %p63
      %p65 = scmp.ne.s32.totalorder %s54, %s57
      %p66 = scmp.eq.s32.totalorder %s23, 1
      %p67 = por %p65, %p66
      %p68 = scmp.ne.s32.totalorder %s57, %s58
      %p69 = scmp.eq.s32.totalorder %s23, 0
      %p70 = por %p68, %p69
      %p71 = scmp.ne.s32.totalorder %s57, %s58
      %p72 = scmp.eq.s32.totalorder %s24, 1
      %p73 = por %p71, %p72
      %p75 = scmp.ne.s32.totalorder %s58, %s74
      %p76 = scmp.eq.s32.totalorder %s24, 0
      %p77 = por %p75, %p76
      %s78 = ssub.s32 %s18, %s25
      %p79 = scmp.eq.s32.totalorder %s78, 0
      %s81 = sadd.s32 %s80, 1
      %s82 = scalar_select %p79, %s80, %s81
      %p85 = pneg %p79
      %p86 = scmp.eq.s32.totalorder %s18, 1
      %p87 = por %p85, %p86
      %p88 = scmp.ne.s32.totalorder %s80, %s83
      %p89 = scmp.eq.s32.totalorder %s18, 0
      %p90 = por %p88, %p89
      %p91 = scmp.ne.s32.totalorder %s80, %s83
      %p92 = scmp.eq.s32.totalorder %s23, 1
      %p93 = por %p91, %p92
      %p94 = scmp.ne.s32.totalorder %s83, %s84
      %p95 = scmp.eq.s32.totalorder %s23, 0
      %p96 = por %p94, %p95
      %p97 = scmp.ne.s32.totalorder %s83, %s84
      %p98 = scmp.eq.s32.totalorder %s24, 1
      %p99 = por %p97, %p98
      %p101 = scmp.ne.s32.totalorder %s84, %s100
      %p102 = scmp.eq.s32.totalorder %s24, 0
      %p103 = por %p101, %p102
      %s105 = sadd.s32 %s104, 1
      %p108 = scmp.eq.s32.totalorder %s18, 1
      %p109 = scmp.ne.s32.totalorder %s104, %s106
      %p110 = scmp.eq.s32.totalorder %s18, 0
      %p111 = por %p109, %p110
      %p112 = scmp.ne.s32.totalorder %s104, %s106
      %p113 = scmp.eq.s32.totalorder %s23, 1
      %p114 = por %p112, %p113
      %p115 = scmp.ne.s32.totalorder %s106, %s107
      %p116 = scmp.eq.s32.totalorder %s23, 0
      %p117 = por %p115, %p116
      %p118 = scmp.ne.s32.totalorder %s106, %s107
      %p119 = scmp.eq.s32.totalorder %s24, 1
      %p120 = por %p118, %p119
      %p122 = scmp.ne.s32.totalorder %s107, %s121
      %p123 = scmp.eq.s32.totalorder %s24, 0
      %p124 = por %p122, %p123
      %s126 = sadd.s32 %s125, 1
      %p129 = scmp.eq.s32.totalorder %s18, 1
      %p130 = scmp.ne.s32.totalorder %s125, %s127
      %p131 = scmp.eq.s32.totalorder %s18, 0
      %p132 = por %p130, %p131
      %p133 = scmp.ne.s32.totalorder %s125, %s127
      %p134 = scmp.eq.s32.totalorder %s23, 1
      %p135 = por %p133, %p134
      %p136 = scmp.ne.s32.totalorder %s127, %s128
      %p137 = scmp.eq.s32.totalorder %s23, 0
      %p138 = por %p136, %p137
      %p139 = scmp.ne.s32.totalorder %s127, %s128
      %p140 = scmp.eq.s32.totalorder %s24, 1
      %p141 = por %p139, %p140
      %p143 = scmp.ne.s32.totalorder %s128, %s142
      %p144 = scmp.eq.s32.totalorder %s24, 0
      %p145 = por %p143, %p144
      %s146 = ssub.s32 %s18, %s25
      %p147 = scmp.eq.s32.totalorder %s146, 0
      %s149 = sadd.s32 %s148, 1
      %s150 = scalar_select %p147, %s148, %s149
      %p153 = pneg %p147
      %p154 = scmp.eq.s32.totalorder %s18, 1
      %p155 = por %p153, %p154
      %p156 = scmp.ne.s32.totalorder %s148, %s151
      %p157 = scmp.eq.s32.totalorder %s18, 0
      %p158 = por %p156, %p157
      %p159 = scmp.ne.s32.totalorder %s148, %s151
      %p160 = scmp.eq.s32.totalorder %s23, 1
      %p161 = por %p159, %p160
      %p162 = scmp.ne.s32.totalorder %s151, %s152
      %p163 = scmp.eq.s32.totalorder %s23, 0
      %p164 = por %p162, %p163
      %p165 = scmp.ne.s32.totalorder %s151, %s152
      %p166 = scmp.eq.s32.totalorder %s24, 1
      %p167 = por %p165, %p166
      %p169 = scmp.ne.s32.totalorder %s152, %s168
      %p170 = scmp.eq.s32.totalorder %s24, 0
      %p171 = por %p169, %p170
      %p172 = scmp.le.s32.totalorder 1, %s18
      %p173 = scmp.lt.s32.totalorder %s18, 3
      %p174 = pnand %p172, %p173
      %p175 = pneg %p174
      // Predicated region
      $region9: #{critic_forward.1} parent=5 // pred_check
        _
      $region10: #{critic_forward.1} parent=5 // pred_check_branch
        %177 = sbr.rel (%p174) target = $region12
      $region11: #{critic_forward.1} parent=5 // pred_region
        %s178 = ssub.s32 %s18, 1
        // Predicated region
        $region13: #{critic_forward.1} parent=11 // pred_check
          %p179 = pneg %p117
        $region14: #{critic_forward.1} parent=11 // pred_check_branch
          %181 = sbr.rel (%p179) target = $region16
        $region15: #{critic_forward.1} parent=11 // pred_region
          _
        $region16: #{critic_forward.1} parent=11 // pred_fallthru
          _
        // Predicated region
        $region17: #{critic_forward.1} parent=11 // pred_check
          %p182 = pneg %p138
        $region18: #{critic_forward.1} parent=11 // pred_check_branch
          %184 = sbr.rel (%p182) target = $region20
        $region19: #{critic_forward.1} parent=11 // pred_region
          %s186 = ssub.s32 256, 256
          %187 = vsyncadd [#allocation6], %s186
          %s188 = sshll.u32 [#allocation5], 4
          %s189 = int_to_ptr.vmem [resolvable:$true] %s188
          %194 = dma.hbm_to_vmem [thread:$0]  %s4, 256, %s189, [#allocation6], 128, 128, 8
        $region20: #{critic_forward.1} parent=11 // pred_fallthru
          _
      $region12: #{critic_forward.1} parent=5 // pred_fallthru
        _
      %p195 = scmp.lt.s32.totalorder %s18, 2
      // Predicated region
      $region21: #{critic_forward.1} parent=5 // pred_check
        %p196 = pneg %p195
      $region22: #{critic_forward.1} parent=5 // pred_check_branch
        %198 = sbr.rel (%p196) target = $region24
      $region23: #{critic_forward.1} parent=5 // pred_region
        // Predicated region
        $region25: #{critic_forward.1} parent=23 // pred_check
          %p199 = pneg %p38
        $region26: #{critic_forward.1} parent=23 // pred_check_branch
          %201 = sbr.rel (%p199) target = $region28
        $region27: #{critic_forward.1} parent=23 // pred_region
          %s202 = smul.u32 2, %s18
          %p203 = scmp.lt.s32.totalorder %s202, 3
          %s204 = scalar_select %p203, %s202, 3
          %s205 = smul.addr %s204, 8
          %s206 = scalar_lea.vmem %s0, %s205
          %s207 = smul.u32 2, %s18
        $region28: #{critic_forward.1} parent=23 // pred_fallthru
          _
        // Predicated region
        $region29: #{critic_forward.1} parent=23 // pred_check
          %p208 = pneg %p64
        $region30: #{critic_forward.1} parent=23 // pred_check_branch
          %210 = sbr.rel (%p208) target = $region32
        $region31: #{critic_forward.1} parent=23 // pred_region
          %s211 = smul.u32 2, %s18
          %p212 = scmp.lt.s32.totalorder %s211, 3
          %s213 = scalar_select %p212, %s211, 3
          %s214 = smul.addr %s213, 8
          %s215 = scalar_lea.vmem %s1, %s214
          %s216 = smul.u32 2, %s18
        $region32: #{critic_forward.1} parent=23 // pred_fallthru
          _
        // Predicated region
        $region33: #{critic_forward.1} parent=23 // pred_check
          %p217 = pneg %p90
        $region34: #{critic_forward.1} parent=23 // pred_check_branch
          %219 = sbr.rel (%p217) target = $region36
        $region35: #{critic_forward.1} parent=23 // pred_region
          %s220 = sand.u32 %s80, 1
          %s221 = scalar_lea.sflag [#allocation3], %s220
          %s222 = sand.u32 %s80, 1
          %s223 = smul.addr %s222, 16
          %s224 = scalar_lea.vmem [#allocation2], %s223
          %s225 = smul.u32 2, %s18
          %s227 = ssub.s32 256, 256
          %228 = vsyncadd %s221, %s227
          %s229 = smul.addr %s225, 128
          %s230 = scalar_lea.hbm %s2, %s229
          %s231 = sshll.u32 %s224, 4
          %s232 = int_to_ptr.vmem [resolvable:$true] %s231
          %237 = dma.hbm_to_vmem [thread:$0]  %s230, 256, %s232, %s221, 128, 128, 8
        $region36: #{critic_forward.1} parent=23 // pred_fallthru
          _
      $region24: #{critic_forward.1} parent=5 // pred_fallthru
        _
      %p238 = scmp.le.s32.totalorder 1, %s18
      %p239 = scmp.lt.s32.totalorder %s18, 3
      %p240 = pnand %p238, %p239
      %p241 = pneg %p240
      // Predicated region
      $region37: #{critic_forward.1} parent=5 // pred_check
        _
      $region38: #{critic_forward.1} parent=5 // pred_check_branch
        %243 = sbr.rel (%p240) target = $region40
      $region39: #{critic_forward.1} parent=5 // pred_region
        %s244 = ssub.s32 %s18, 1
        %s245 = sand.u32 %s83, 1
        %s246 = scalar_lea.sflag [#allocation3], %s245
        %s247 = sand.u32 %s83, 1
        %s248 = smul.addr %s247, 16
        %s249 = scalar_lea.vmem [#allocation2], %s248
        // Predicated region
        $region41: #{critic_forward.1} parent=39 // pred_check
          %p250 = pneg %p96
        $region42: #{critic_forward.1} parent=39 // pred_check_branch
          %252 = sbr.rel (%p250) target = $region44
        $region43: #{critic_forward.1} parent=39 // pred_region
          %253 = dma.done %s246, 256
        $region44: #{critic_forward.1} parent=39 // pred_fallthru
          _
        // Predicated region
        $region45: #{critic_forward.1} parent=39 // pred_check
          %p254 = pneg %p138
        $region46: #{critic_forward.1} parent=39 // pred_check_branch
          %256 = sbr.rel (%p254) target = $region48
        $region47: #{critic_forward.1} parent=39 // pred_region
          %257 = dma.done [#allocation6], 256
        $region48: #{critic_forward.1} parent=39 // pred_fallthru
          _
        %s258 = smul.u32 2, %s23
        %p259 = scmp.lt.s32.totalorder %s258, 3
        %s260 = scalar_select %p259, %s258, 3
        %s261 = smul.addr %s260, 8
        %s262 = scalar_lea.vmem %s0, %s261
        %p263 = pneg %p44
        %p264 = pneg %p41
        %s265 = smul.u32 2, %s23
        %p266 = scmp.lt.s32.totalorder %s265, 3
        %s267 = scalar_select %p266, %s265, 3
        %s268 = smul.addr %s267, 8
        %s269 = scalar_lea.vmem %s1, %s268
        %p270 = pneg %p70
        %p271 = pneg %p67
        %s272 = sand.u32 %s83, 1
        %s273 = scalar_lea.sflag [#allocation3], %s272
        %s274 = sand.u32 %s83, 1
        %s275 = smul.addr %s274, 16
        %s276 = scalar_lea.vmem [#allocation2], %s275
        %p277 = pneg %p96
        %p278 = pneg %p93
        %p279 = pneg %p117
        %p280 = pneg %p114
        %p281 = pneg %p138
        %p282 = pneg %p135
        %p283 = pneg %p164
        %p284 = pneg %p161
        %s285 = sand.u32 %s151, 1
        %s286 = scalar_lea.sflag [#allocation4], %s285
        %s287 = sand.u32 %s151, 1
        %s288 = smul.addr %s287, 2
        %s289 = scalar_lea.vmem [#allocation7], %s288
        %s290 = smul.u32 2, %s23
        %p291 = scmp.lt.s32.totalorder %s290, 3
        %s292 = scalar_select %p291, %s290, 3
        %s293 = smul.addr %s292, 8
        %s294 = scalar_lea.vmem %s0, %s293
        %s295 = smul.u32 2, %s23
        %s296 = smul.u32 2, %s23
        %p297 = scmp.lt.s32.totalorder %s296, 3
        %s298 = scalar_select %p297, %s296, 3
        %s299 = smul.addr %s298, 8
        %s300 = scalar_lea.vmem %s1, %s299
        %s301 = smul.u32 2, %s23
        %s302 = smul.u32 2, %s23
        %v303 = vld [vmem:[%s3] sm:$0xff]
        %v304 = vld [vmem:[%s3 + $0x8] sm:$0xff]
        %v305 = vld [vmem:[%s3 + $0x10] sm:$0xff]
        %v306 = vld [vmem:[%s3 + $0x18] sm:$0xff]
        %v307 = vld [vmem:[%s3 + $0x20] sm:$0xff]
        %v308 = vld [vmem:[%s3 + $0x28] sm:$0xff]
        %v309 = vld [vmem:[#allocation5] sm:$0xff]
        %v310 = vld [vmem:[#allocation5 + $0x8] sm:$0xf]
        %v311 = vld [vmem:[%s294] sm:$0xff]
        %v312 = vld [vmem:[%s294 + $0x8] sm:$0xff]
        %v313 = vlaneseq
        %v314 = vshrl.u32 %v313, 7
        %v315 = vsub.s32 0, %v314
        %v316 = vrot.slane %v309, %v315
        %vm317 = vcmask 130048
        %v319 = vsel %vm317, %v311, 0
        %v322 = vsel %vm317, %v312, 0
        %324 = vmatprep.subr.mxu0 0.0
        %325 = vmatpush1.msra.mxu0 %v303
        %326 = vmatprep.subr.mxu0 0.0
        %327 = vmatpush1.msra.mxu0 %v304
        %328 = vmatprep.subr.mxu0 0.0
        %329 = vmatpush1.msra.mxu0 0.0
        %330 = vmatprep.subr.mxu0 0.0
        %331 = vmatpush1.msra.mxu0 0.0
        %332 = vmatprep.subr.mxu0 0.0
        %333 = vmatpush1.msra.mxu0 0.0
        %334 = vmatprep.subr.mxu0 0.0
        %335 = vmatpush1.msra.mxu0 0.0
        %336 = vmatprep.subr.mxu0 0.0
        %337 = vmatpush1.msra.mxu0 0.0
        %338 = vmatprep.subr.mxu0 0.0
        %339 = vmatpush1.msra.mxu0 0.0
        %340 = vmatprep.subr.mxu0 0.0
        %341 = vmatpush1.msra.mxu0 0.0
        %342 = vmatprep.subr.mxu0 0.0
        %343 = vmatpush1.msra.mxu0 0.0
        %344 = vmatprep.subr.mxu0 0.0
        %345 = vmatpush1.msra.mxu0 0.0
        %346 = vmatprep.subr.mxu0 0.0
        %347 = vmatpush1.msra.mxu0 0.0
        %348 = vmatprep.subr.mxu0 0.0
        %349 = vmatpush1.msra.mxu0 0.0
        %350 = vmatprep.subr.mxu0 0.0
        %351 = vmatpush1.msra.mxu0 0.0
        %352 = vmatprep.subr.mxu0 0.0
        %353 = vmatpush1.msra.mxu0 0.0
        %354 = vmatprep.subr.mxu0 0.0
        %355 = vmatpush1.msra.mxu0 0.0
        %356 = vmatprep.subr.mxu0 0.0
        %357 = vmatpush1.msra.mxu0 0.0
        %358 = vmatprep.subr.mxu0 0.0
        %359 = vmatpush1.msra.mxu0 0.0
        %360 = vmatprep.subr.mxu0 0.0
        %361 = vmatpush1.msra.mxu0 0.0
        %362 = vmatprep.subr.mxu0 0.0
        %363 = vmatpush1.msra.mxu0 0.0
        %364 = vmatprep.subr.mxu0 0.0
        %365 = vmatpush1.msra.mxu0 0.0
        %366 = vmatprep.subr.mxu0 0.0
        %367 = vmatpush1.msra.mxu0 0.0
        %368 = vmatprep.subr.mxu0 0.0
        %369 = vmatpush1.msra.mxu0 0.0
        %370 = vmatprep.subr.mxu0 0.0
        %371 = vmatpush1.msra.mxu0 0.0
        %372 = vmatprep.subr.mxu0 0.0
        %373 = vmatpush1.msra.mxu0 0.0
        %374 = vmatprep.subr.mxu0 0.0
        %375 = vmatpush1.msra.mxu0 0.0
        %376 = vmatprep.subr.mxu0 0.0
        %377 = vmatpush1.msra.mxu0 0.0
        %378 = vmatprep.subr.mxu0 0.0
        %379 = vmatpush1.msra.mxu0 0.0
        %380 = vmatprep.subr.mxu0 0.0
        %381 = vmatpush1.msra.mxu0 0.0
        %382 = vmatprep.subr.mxu0 0.0
        %383 = vmatpush1.msra.mxu0 0.0
        %384 = vmatprep.subr.mxu0 0.0
        %385 = vmatpush1.msra.mxu0 0.0
        %386 = vmatprep.subr.mxu0 0.0
        %387 = vmatpush1.msra.mxu0 0.0
        %388 = vmatprep.mubr.f32.mxu0 0.0
        %389 = vmatmul.mubr.f32.gmra.mrb[0].mxu0 %v319
        %v390 = vpop.f32.mrb[0].mxu0
        %v391 = vadd.f32 %v316, %v390
        %v392 = vpop.f32.mrb[0].mxu0
        %393 = vmatprep.mubr.f32.mxu0 0.0
        %394 = vmatmul.mubr.f32.gmra.mrb[0].mxu0 %v322
        %v395 = vpop.f32.mrb[0].mxu0
        %v396 = vadd.f32 %v316, %v395
        %v397 = vpop.f32.mrb[0].mxu0
        %398 = vdwg.mxu0
        %v401 = vcombine.high %v391, %v391
        %v403 = vunpack.c.l.s4 1966171168
        %v404 = vunpack.c.0.s8 %v403
        %v405 = vlaneseq
        %v406 = vshrl.u32 %v405, 7
        %v407 = vsub.s32 %v404, %v406
        %v408 = vrot.slane %v391, %v407
        %v410 = vunpack.c.l.s4 1966171168
        %v411 = vunpack.c.0.s8 %v410
        %v412 = vlaneseq
        %v413 = vshrl.u32 %v412, 7
        %v414 = vsub.s32 %v411, %v413
        %v415 = vrot.slane %v401, %v414
        %v416 = vcombine.high %v408, %v408
        %v417 = vcombine.high %v415, %v415
        %v419 = vunpack.c.l.s4 1966171168
        %v420 = vunpack.c.0.s8 %v419
        %v421 = vlaneseq
        %v422 = vshrl.u32 %v421, 7
        %v423 = vsub.s32 %v420, %v422
        %v424 = vrot.slane %v408, %v423
        %v426 = vunpack.c.l.s4 1966171168
        %v427 = vunpack.c.0.s8 %v426
        %v428 = vlaneseq
        %v429 = vshrl.u32 %v428, 7
        %v430 = vsub.s32 %v427, %v429
        %v431 = vrot.slane %v415, %v430
        %v433 = vunpack.c.l.s4 1966171168
        %v434 = vunpack.c.0.s8 %v433
        %v435 = vlaneseq
        %v436 = vshrl.u32 %v435, 7
        %v437 = vsub.s32 %v434, %v436
        %v438 = vrot.slane %v416, %v437
        %v440 = vunpack.c.l.s4 1966171168
        %v441 = vunpack.c.0.s8 %v440
        %v442 = vlaneseq
        %v443 = vshrl.u32 %v442, 7
        %v444 = vsub.s32 %v441, %v443
        %v445 = vrot.slane %v417, %v444
        %v446 = vcombine.high %v424, %v424
        %v447 = vcombine.high %v431, %v431
        %v448 = vcombine.high %v438, %v438
        %v449 = vcombine.high %v445, %v445
        %v450 = vcombine.high %v396, %v396
        %v452 = vunpack.c.l.s4 1966171168
        %v453 = vunpack.c.0.s8 %v452
        %v454 = vlaneseq
        %v455 = vshrl.u32 %v454, 7
        %v456 = vsub.s32 %v453, %v455
        %v457 = vrot.slane %v396, %v456
        %v459 = vunpack.c.l.s4 1966171168
        %v460 = vunpack.c.0.s8 %v459
        %v461 = vlaneseq
        %v462 = vshrl.u32 %v461, 7
        %v463 = vsub.s32 %v460, %v462
        %v464 = vrot.slane %v450, %v463
        %v465 = vcombine.high %v457, %v457
        %v466 = vcombine.high %v464, %v464
        %v468 = vunpack.c.l.s4 1966171168
        %v469 = vunpack.c.0.s8 %v468
        %v470 = vlaneseq
        %v471 = vshrl.u32 %v470, 7
        %v472 = vsub.s32 %v469, %v471
        %v473 = vrot.slane %v457, %v472
        %v475 = vunpack.c.l.s4 1966171168
        %v476 = vunpack.c.0.s8 %v475
        %v477 = vlaneseq
        %v478 = vshrl.u32 %v477, 7
        %v479 = vsub.s32 %v476, %v478
        %v480 = vrot.slane %v464, %v479
        %v482 = vunpack.c.l.s4 1966171168
        %v483 = vunpack.c.0.s8 %v482
        %v484 = vlaneseq
        %v485 = vshrl.u32 %v484, 7
        %v486 = vsub.s32 %v483, %v485
        %v487 = vrot.slane %v465, %v486
        %v489 = vunpack.c.l.s4 1966171168
        %v490 = vunpack.c.0.s8 %v489
        %v491 = vlaneseq
        %v492 = vshrl.u32 %v491, 7
        %v493 = vsub.s32 %v490, %v492
        %v494 = vrot.slane %v466, %v493
        %v495 = vcombine.high %v473, %v473
        %v496 = vcombine.high %v480, %v480
        %v497 = vcombine.high %v487, %v487
        %v498 = vcombine.high %v494, %v494
        %v499 = vlaneseq
        %v500 = vshrl.u32 %v499, 7
        %v501 = vsub.s32 0, %v500
        %v502 = vrot.slane %v424, %v501
        %v503 = vlaneseq
        %v504 = vshrl.u32 %v503, 7
        %v505 = vsub.s32 0, %v504
        %v506 = vrot.slane %v438, %v505
        %v507 = vlaneseq
        %v508 = vshrl.u32 %v507, 7
        %v509 = vsub.s32 0, %v508
        %v510 = vrot.slane %v446, %v509
        %v511 = vlaneseq
        %v512 = vshrl.u32 %v511, 7
        %v513 = vsub.s32 0, %v512
        %v514 = vrot.slane %v448, %v513
        %v515 = vlaneseq
        %v516 = vshrl.u32 %v515, 7
        %v517 = vsub.s32 0, %v516
        %v518 = vrot.slane %v431, %v517
        %v519 = vlaneseq
        %v520 = vshrl.u32 %v519, 7
        %v521 = vsub.s32 0, %v520
        %v522 = vrot.slane %v445, %v521
        %v523 = vlaneseq
        %v524 = vshrl.u32 %v523, 7
        %v525 = vsub.s32 0, %v524
        %v526 = vrot.slane %v447, %v525
        %v527 = vlaneseq
        %v528 = vshrl.u32 %v527, 7
        %v529 = vsub.s32 0, %v528
        %v530 = vrot.slane %v449, %v529
        %v531 = vlaneseq
        %v532 = vshrl.u32 %v531, 7
        %v533 = vsub.s32 0, %v532
        %v534 = vrot.slane %v473, %v533
        %v535 = vlaneseq
        %v536 = vshrl.u32 %v535, 7
        %v537 = vsub.s32 0, %v536
        %v538 = vrot.slane %v487, %v537
        %v539 = vlaneseq
        %v540 = vshrl.u32 %v539, 7
        %v541 = vsub.s32 0, %v540
        %v542 = vrot.slane %v495, %v541
        %v543 = vlaneseq
        %v544 = vshrl.u32 %v543, 7
        %v545 = vsub.s32 0, %v544
        %v546 = vrot.slane %v497, %v545
        %v547 = vlaneseq
        %v548 = vshrl.u32 %v547, 7
        %v549 = vsub.s32 0, %v548
        %v550 = vrot.slane %v480, %v549
        %v551 = vlaneseq
        %v552 = vshrl.u32 %v551, 7
        %v553 = vsub.s32 0, %v552
        %v554 = vrot.slane %v494, %v553
        %v555 = vlaneseq
        %v556 = vshrl.u32 %v555, 7
        %v557 = vsub.s32 0, %v556
        %v558 = vrot.slane %v496, %v557
        %v559 = vlaneseq
        %v560 = vshrl.u32 %v559, 7
        %v561 = vsub.s32 0, %v560
        %v562 = vrot.slane %v498, %v561
        %v579 = vadd.f32 %v502, %v391
        %v580 = vadd.f32 %v506, %v391
        %v581 = vadd.f32 %v510, %v391
        %v582 = vadd.f32 %v514, %v391
        %v583 = vadd.f32 %v518, %v391
        %v584 = vadd.f32 %v522, %v391
        %v585 = vadd.f32 %v526, %v391
        %v586 = vadd.f32 %v530, %v391
        %v587 = vadd.f32 %v534, %v396
        %v588 = vadd.f32 %v538, %v396
        %v589 = vadd.f32 %v542, %v396
        %v590 = vadd.f32 %v546, %v396
        %v591 = vadd.f32 %v550, %v396
        %v592 = vadd.f32 %v554, %v396
        %v593 = vadd.f32 %v558, %v396
        %v594 = vadd.f32 %v562, %v396
        %vm595 = vcmp.gt.f32.partialorder %v579, 0.0
        %vm596 = vcmp.gt.f32.partialorder %v580, 0.0
        %vm597 = vcmp.gt.f32.partialorder %v581, 0.0
        %vm598 = vcmp.gt.f32.partialorder %v582, 0.0
        %vm599 = vcmp.gt.f32.partialorder %v583, 0.0
        %vm600 = vcmp.gt.f32.partialorder %v584, 0.0
        %vm601 = vcmp.gt.f32.partialorder %v585, 0.0
        %vm602 = vcmp.gt.f32.partialorder %v586, 0.0
        %vm603 = vcmp.gt.f32.partialorder %v587, 0.0
        %vm604 = vcmp.gt.f32.partialorder %v588, 0.0
        %vm605 = vcmp.gt.f32.partialorder %v589, 0.0
        %vm606 = vcmp.gt.f32.partialorder %v590, 0.0
        %vm607 = vcmp.gt.f32.partialorder %v591, 0.0
        %vm608 = vcmp.gt.f32.partialorder %v592, 0.0
        %vm609 = vcmp.gt.f32.partialorder %v593, 0.0
        %vm610 = vcmp.gt.f32.partialorder %v594, 0.0
        %v611 = vmul.f32 %v579, 0.2
        %v612 = vmul.f32 %v580, 0.2
        %v613 = vmul.f32 %v581, 0.2
        %v614 = vmul.f32 %v582, 0.2
        %v615 = vmul.f32 %v583, 0.2
        %v616 = vmul.f32 %v584, 0.2
        %v617 = vmul.f32 %v585, 0.2
        %v618 = vmul.f32 %v586, 0.2
        %v619 = vmul.f32 %v587, 0.2
        %v620 = vmul.f32 %v588, 0.2
        %v621 = vmul.f32 %v589, 0.2
        %v622 = vmul.f32 %v590, 0.2
        %v623 = vmul.f32 %v591, 0.2
        %v624 = vmul.f32 %v592, 0.2
        %v625 = vmul.f32 %v593, 0.2
        %v626 = vmul.f32 %v594, 0.2
        %v627 = vsel %vm595, %v579, %v611
        %v628 = vsel %vm596, %v580, %v612
        %v629 = vsel %vm597, %v581, %v613
        %v630 = vsel %vm598, %v582, %v614
        %v631 = vsel %vm599, %v583, %v615
        %v632 = vsel %vm600, %v584, %v616
        %v633 = vsel %vm601, %v585, %v617
        %v634 = vsel %vm602, %v586, %v618
        %v635 = vsel %vm603, %v587, %v619
        %v636 = vsel %vm604, %v588, %v620
        %v637 = vsel %vm605, %v589, %v621
        %v638 = vsel %vm606, %v590, %v622
        %v639 = vsel %vm607, %v591, %v623
        %v640 = vsel %vm608, %v592, %v624
        %v641 = vsel %vm609, %v593, %v625
        %v642 = vsel %vm610, %v594, %v626
        %v643 = vlaneseq
        %v644 = vshrl.u32 %v643, 7
        %v645 = vsub.s32 1, %v644
        %v646 = vrot.slane %v309, %v645
        %v647 = vmul.f32 %v627, %v646
        %v648 = vmul.f32 %v628, %v646
        %v649 = vmul.f32 %v629, %v646
        %v650 = vmul.f32 %v630, %v646
        %v651 = vmul.f32 %v631, %v646
        %v652 = vmul.f32 %v632, %v646
        %v653 = vmul.f32 %v633, %v646
        %v654 = vmul.f32 %v634, %v646
        %v655 = vmul.f32 %v635, %v646
        %v656 = vmul.f32 %v636, %v646
        %v657 = vmul.f32 %v637, %v646
        %v658 = vmul.f32 %v638, %v646
        %v659 = vmul.f32 %v639, %v646
        %v660 = vmul.f32 %v640, %v646
        %v661 = vmul.f32 %v641, %v646
        %v662 = vmul.f32 %v642, %v646
        %vm663 = vcmask 97280
        %v664 = vsel %vm663, %v647, 0.0
        %665 = vadd.xlane.f32.xlu0 %v664
        %v666 = vpop.xlane.xlu0 %665
        %v667 = vsel %vm663, %v648, 0.0
        %668 = vadd.xlane.f32.xlu0 %v667
        %v669 = vpop.xlane.xlu0 %668
        %v670 = vsel %vm663, %v649, 0.0
        %671 = vadd.xlane.f32.xlu0 %v670
        %v672 = vpop.xlane.xlu0 %671
        %v673 = vsel %vm663, %v650, 0.0
        %674 = vadd.xlane.f32.xlu0 %v673
        %v675 = vpop.xlane.xlu0 %674
        %v676 = vsel %vm663, %v651, 0.0
        %677 = vadd.xlane.f32.xlu0 %v676
        %v678 = vpop.xlane.xlu0 %677
        %v679 = vsel %vm663, %v652, 0.0
        %680 = vadd.xlane.f32.xlu0 %v679
        %v681 = vpop.xlane.xlu0 %680
        %v682 = vsel %vm663, %v653, 0.0
        %683 = vadd.xlane.f32.xlu0 %v682
        %v684 = vpop.xlane.xlu0 %683
        %v685 = vsel %vm663, %v654, 0.0
        %686 = vadd.xlane.f32.xlu0 %v685
        %v687 = vpop.xlane.xlu0 %686
        %v688 = vsel %vm663, %v655, 0.0
        %689 = vadd.xlane.f32.xlu0 %v688
        %v690 = vpop.xlane.xlu0 %689
        %v691 = vsel %vm663, %v656, 0.0
        %692 = vadd.xlane.f32.xlu0 %v691
        %v693 = vpop.xlane.xlu0 %692
        %v694 = vsel %vm663, %v657, 0.0
        %695 = vadd.xlane.f32.xlu0 %v694
        %v696 = vpop.xlane.xlu0 %695
        %v697 = vsel %vm663, %v658, 0.0
        %698 = vadd.xlane.f32.xlu0 %v697
        %v699 = vpop.xlane.xlu0 %698
        %v700 = vsel %vm663, %v659, 0.0
        %701 = vadd.xlane.f32.xlu0 %v700
        %v702 = vpop.xlane.xlu0 %701
        %v703 = vsel %vm663, %v660, 0.0
        %704 = vadd.xlane.f32.xlu0 %v703
        %v705 = vpop.xlane.xlu0 %704
        %v706 = vsel %vm663, %v661, 0.0
        %707 = vadd.xlane.f32.xlu0 %v706
        %v708 = vpop.xlane.xlu0 %707
        %v709 = vsel %vm663, %v662, 0.0
        %710 = vadd.xlane.f32.xlu0 %v709
        %v711 = vpop.xlane.xlu0 %710
        %v712 = vld [vmem:[%s300] sm:$0xff]
        %v713 = vld [vmem:[%s300 + $0x8] sm:$0xff]
        %v714 = vsub.f32 %v712, 1.0
        %v715 = vsub.f32 %v713, 1.0
        %v716 = vmul.f32 %v714, 1e+30
        %v717 = vmul.f32 %v715, 1e+30
        %v720 = vlaneseq
        %v721 = vshrl.u32 %v720, 7
        %v722 = vsub.s32 0, %v721
        %v723 = vrot.slane %v716, %v722
        %725 = vbcast.lane.b32.xlu0 %v723, 256
        %v726 = vpop.permute.xlu0 %725
        %v727 = vlaneseq
        %v728 = vshrl.u32 %v727, 7
        %v729 = vsub.s32 1, %v728
        %v730 = vrot.slane %v716, %v729
        %732 = vbcast.lane.b32.xlu0 %v730, 256
        %v733 = vpop.permute.xlu0 %732
        %v734 = vlaneseq
        %v735 = vshrl.u32 %v734, 7
        %v736 = vsub.s32 2, %v735
        %v737 = vrot.slane %v716, %v736
        %739 = vbcast.lane.b32.xlu0 %v737, 256
        %v740 = vpop.permute.xlu0 %739
        %v741 = vlaneseq
        %v742 = vshrl.u32 %v741, 7
        %v743 = vsub.s32 3, %v742
        %v744 = vrot.slane %v716, %v743
        %746 = vbcast.lane.b32.xlu0 %v744, 256
        %v747 = vpop.permute.xlu0 %746
        %v748 = vlaneseq
        %v749 = vshrl.u32 %v748, 7
        %v750 = vsub.s32 4, %v749
        %v751 = vrot.slane %v716, %v750
        %753 = vbcast.lane.b32.xlu0 %v751, 256
        %v754 = vpop.permute.xlu0 %753
        %v755 = vlaneseq
        %v756 = vshrl.u32 %v755, 7
        %v757 = vsub.s32 5, %v756
        %v758 = vrot.slane %v716, %v757
        %760 = vbcast.lane.b32.xlu0 %v758, 256
        %v761 = vpop.permute.xlu0 %760
        %v762 = vlaneseq
        %v763 = vshrl.u32 %v762, 7
        %v764 = vsub.s32 6, %v763
        %v765 = vrot.slane %v716, %v764
        %767 = vbcast.lane.b32.xlu0 %v765, 256
        %v768 = vpop.permute.xlu0 %767
        %v769 = vlaneseq
        %v770 = vshrl.u32 %v769, 7
        %v771 = vsub.s32 7, %v770
        %v772 = vrot.slane %v716, %v771
        %774 = vbcast.lane.b32.xlu0 %v772, 256
        %v775 = vpop.permute.xlu0 %774
        %v776 = vlaneseq
        %v777 = vshrl.u32 %v776, 7
        %v778 = vsub.s32 0, %v777
        %v779 = vrot.slane %v717, %v778
        %781 = vbcast.lane.b32.xlu0 %v779, 256
        %v782 = vpop.permute.xlu0 %781
        %v783 = vlaneseq
        %v784 = vshrl.u32 %v783, 7
        %v785 = vsub.s32 1, %v784
        %v786 = vrot.slane %v717, %v785
        %788 = vbcast.lane.b32.xlu0 %v786, 256
        %v789 = vpop.permute.xlu0 %788
        %v790 = vlaneseq
        %v791 = vshrl.u32 %v790, 7
        %v792 = vsub.s32 2, %v791
        %v793 = vrot.slane %v717, %v792
        %795 = vbcast.lane.b32.xlu0 %v793, 256
        %v796 = vpop.permute.xlu0 %795
        %v797 = vlaneseq
        %v798 = vshrl.u32 %v797, 7
        %v799 = vsub.s32 3, %v798
        %v800 = vrot.slane %v717, %v799
        %802 = vbcast.lane.b32.xlu0 %v800, 256
        %v803 = vpop.permute.xlu0 %802
        %v804 = vlaneseq
        %v805 = vshrl.u32 %v804, 7
        %v806 = vsub.s32 4, %v805
        %v807 = vrot.slane %v717, %v806
        %809 = vbcast.lane.b32.xlu0 %v807, 256
        %v810 = vpop.permute.xlu0 %809
        %v811 = vlaneseq
        %v812 = vshrl.u32 %v811, 7
        %v813 = vsub.s32 5, %v812
        %v814 = vrot.slane %v717, %v813
        %816 = vbcast.lane.b32.xlu0 %v814, 256
        %v817 = vpop.permute.xlu0 %816
        %v818 = vlaneseq
        %v819 = vshrl.u32 %v818, 7
        %v820 = vsub.s32 6, %v819
        %v821 = vrot.slane %v717, %v820
        %823 = vbcast.lane.b32.xlu0 %v821, 256
        %v824 = vpop.permute.xlu0 %823
        %v825 = vlaneseq
        %v826 = vshrl.u32 %v825, 7
        %v827 = vsub.s32 7, %v826
        %v828 = vrot.slane %v717, %v827
        %830 = vbcast.lane.b32.xlu0 %v828, 256
        %v831 = vpop.permute.xlu0 %830
        %v848 = vadd.f32 %v666, %v726
        %v849 = vadd.f32 %v669, %v733
        %v850 = vadd.f32 %v672, %v740
        %v851 = vadd.f32 %v675, %v747
        %v852 = vadd.f32 %v678, %v754
        %v853 = vadd.f32 %v681, %v761
        %v854 = vadd.f32 %v684, %v768
        %v855 = vadd.f32 %v687, %v775
        %v856 = vadd.f32 %v690, %v782
        %v857 = vadd.f32 %v693, %v789
        %v858 = vadd.f32 %v696, %v796
        %v859 = vadd.f32 %v699, %v803
        %v860 = vadd.f32 %v702, %v810
        %v861 = vadd.f32 %v705, %v817
        %v862 = vadd.f32 %v708, %v824
        %v863 = vadd.f32 %v711, %v831
        %880 = vset.pattern.permute.xlu0 0
        %881 = vperm.xlu0 %880, %v848
        %v882 = vpop.permute.xlu0 %881
        %883 = vset.pattern.permute.xlu0 0
        %884 = vperm.xlu0 %883, %v849
        %v885 = vpop.permute.xlu0 %884
        %886 = vset.pattern.permute.xlu0 0
        %887 = vperm.xlu0 %886, %v850
        %v888 = vpop.permute.xlu0 %887
        %889 = vset.pattern.permute.xlu0 0
        %890 = vperm.xlu0 %889, %v851
        %v891 = vpop.permute.xlu0 %890
        %892 = vset.pattern.permute.xlu0 0
        %893 = vperm.xlu0 %892, %v852
        %v894 = vpop.permute.xlu0 %893
        %895 = vset.pattern.permute.xlu0 0
        %896 = vperm.xlu0 %895, %v853
        %v897 = vpop.permute.xlu0 %896
        %898 = vset.pattern.permute.xlu0 0
        %899 = vperm.xlu0 %898, %v854
        %v900 = vpop.permute.xlu0 %899
        %901 = vset.pattern.permute.xlu0 0
        %902 = vperm.xlu0 %901, %v855
        %v903 = vpop.permute.xlu0 %902
        %904 = vset.pattern.permute.xlu0 0
        %905 = vperm.xlu0 %904, %v856
        %v906 = vpop.permute.xlu0 %905
        %907 = vset.pattern.permute.xlu0 0
        %908 = vperm.xlu0 %907, %v857
        %v909 = vpop.permute.xlu0 %908
        %910 = vset.pattern.permute.xlu0 0
        %911 = vperm.xlu0 %910, %v858
        %v912 = vpop.permute.xlu0 %911
        %913 = vset.pattern.permute.xlu0 0
        %914 = vperm.xlu0 %913, %v859
        %v915 = vpop.permute.xlu0 %914
        %916 = vset.pattern.permute.xlu0 0
        %917 = vperm.xlu0 %916, %v860
        %v918 = vpop.permute.xlu0 %917
        %919 = vset.pattern.permute.xlu0 0
        %920 = vperm.xlu0 %919, %v861
        %v921 = vpop.permute.xlu0 %920
        %922 = vset.pattern.permute.xlu0 0
        %923 = vperm.xlu0 %922, %v862
        %v924 = vpop.permute.xlu0 %923
        %925 = vset.pattern.permute.xlu0 0
        %926 = vperm.xlu0 %925, %v863
        %v927 = vpop.permute.xlu0 %926
        %v928 = vlaneseq
        %v929 = vand.u32 %v928, 127
        %v930 = vlaneseq
        %v931 = vshrl.u32 %v930, 7
        %v932 = vsub.s32 %v929, %v931
        %v933 = vrot.slane %v882, %v932
        %v934 = vlaneseq
        %v935 = vshrl.u32 %v934, 7
        %v936 = vsub.s32 %v929, %v935
        %v937 = vrot.slane %v885, %v936
        %v938 = vlaneseq
        %v939 = vshrl.u32 %v938, 7
        %v940 = vsub.s32 %v929, %v939
        %v941 = vrot.slane %v888, %v940
        %v942 = vlaneseq
        %v943 = vshrl.u32 %v942, 7
        %v944 = vsub.s32 %v929, %v943
        %v945 = vrot.slane %v891, %v944
        %v946 = vlaneseq
        %v947 = vshrl.u32 %v946, 7
        %v948 = vsub.s32 %v929, %v947
        %v949 = vrot.slane %v894, %v948
        %v950 = vlaneseq
        %v951 = vshrl.u32 %v950, 7
        %v952 = vsub.s32 %v929, %v951
        %v953 = vrot.slane %v897, %v952
        %v954 = vlaneseq
        %v955 = vshrl.u32 %v954, 7
        %v956 = vsub.s32 %v929, %v955
        %v957 = vrot.slane %v900, %v956
        %v958 = vlaneseq
        %v959 = vshrl.u32 %v958, 7
        %v960 = vsub.s32 %v929, %v959
        %v961 = vrot.slane %v903, %v960
        %v962 = vlaneseq
        %v963 = vshrl.u32 %v962, 7
        %v964 = vsub.s32 %v929, %v963
        %v965 = vrot.slane %v906, %v964
        %v966 = vlaneseq
        %v967 = vshrl.u32 %v966, 7
        %v968 = vsub.s32 %v929, %v967
        %v969 = vrot.slane %v909, %v968
        %v970 = vlaneseq
        %v971 = vshrl.u32 %v970, 7
        %v972 = vsub.s32 %v929, %v971
        %v973 = vrot.slane %v912, %v972
        %v974 = vlaneseq
        %v975 = vshrl.u32 %v974, 7
        %v976 = vsub.s32 %v929, %v975
        %v977 = vrot.slane %v915, %v976
        %v978 = vlaneseq
        %v979 = vshrl.u32 %v978, 7
        %v980 = vsub.s32 %v929, %v979
        %v981 = vrot.slane %v918, %v980
        %v982 = vlaneseq
        %v983 = vshrl.u32 %v982, 7
        %v984 = vsub.s32 %v929, %v983
        %v985 = vrot.slane %v921, %v984
        %v986 = vlaneseq
        %v987 = vshrl.u32 %v986, 7
        %v988 = vsub.s32 %v929, %v987
        %v989 = vrot.slane %v924, %v988
        %v990 = vlaneseq
        %v991 = vshrl.u32 %v990, 7
        %v992 = vsub.s32 %v929, %v991
        %v993 = vrot.slane %v927, %v992
        %vm994 = vcmask 1041409
        %v995 = vsel %vm994, %v937, %v933
        %vm996 = vcmask 1042434
        %v997 = vsel %vm996, %v941, %v995
        %vm998 = vcmask 1043459
        %v999 = vsel %vm998, %v945, %v997
        %vm1000 = vcmask 1044484
        %v1001 = vsel %vm1000, %v949, %v999
        %vm1002 = vcmask 1045509
        %v1003 = vsel %vm1002, %v953, %v1001
        %vm1004 = vcmask 1046534
        %v1005 = vsel %vm1004, %v957, %v1003
        %vm1006 = vcmask 1047559
        %v1007 = vsel %vm1006, %v961, %v1005
        %v1008 = vsel %vm994, %v969, %v965
        %v1009 = vsel %vm996, %v973, %v1008
        %v1010 = vsel %vm998, %v977, %v1009
        %v1011 = vsel %vm1000, %v981, %v1010
        %v1012 = vsel %vm1002, %v985, %v1011
        %v1013 = vsel %vm1004, %v989, %v1012
        %v1014 = vsel %vm1006, %v993, %v1013
        %vm1017 = vcmask 64512
        %v1018 = vsel %vm1017, %v1007, -inf
        %1019 = vmax.xlane.f32.xlu0 %v1018
        %v1020 = vpop.xlane.xlu0 %1019
        %v1021 = vsel %vm1017, %v1014, -inf
        %1022 = vmax.xlane.f32.xlu0 %v1021
        %v1023 = vpop.xlane.xlu0 %1022
        %v1026 = vlaneseq
        %v1027 = vshrl.u32 %v1026, 7
        %v1028 = vsub.s32 0, %v1027
        %v1029 = vrot.slane %v1020, %v1028
        %v1030 = vlaneseq
        %v1031 = vshrl.u32 %v1030, 7
        %v1032 = vsub.s32 1, %v1031
        %v1033 = vrot.slane %v1020, %v1032
        %v1034 = vlaneseq
        %v1035 = vshrl.u32 %v1034, 7
        %v1036 = vsub.s32 2, %v1035
        %v1037 = vrot.slane %v1020, %v1036
        %v1038 = vlaneseq
        %v1039 = vshrl.u32 %v1038, 7
        %v1040 = vsub.s32 3, %v1039
        %v1041 = vrot.slane %v1020, %v1040
        %v1042 = vlaneseq
        %v1043 = vshrl.u32 %v1042, 7
        %v1044 = vsub.s32 4, %v1043
        %v1045 = vrot.slane %v1020, %v1044
        %v1046 = vlaneseq
        %v1047 = vshrl.u32 %v1046, 7
        %v1048 = vsub.s32 5, %v1047
        %v1049 = vrot.slane %v1020, %v1048
        %v1050 = vlaneseq
        %v1051 = vshrl.u32 %v1050, 7
        %v1052 = vsub.s32 6, %v1051
        %v1053 = vrot.slane %v1020, %v1052
        %v1054 = vlaneseq
        %v1055 = vshrl.u32 %v1054, 7
        %v1056 = vsub.s32 7, %v1055
        %v1057 = vrot.slane %v1020, %v1056
        %v1058 = vlaneseq
        %v1059 = vshrl.u32 %v1058, 7
        %v1060 = vsub.s32 0, %v1059
        %v1061 = vrot.slane %v1023, %v1060
        %v1062 = vlaneseq
        %v1063 = vshrl.u32 %v1062, 7
        %v1064 = vsub.s32 1, %v1063
        %v1065 = vrot.slane %v1023, %v1064
        %v1066 = vlaneseq
        %v1067 = vshrl.u32 %v1066, 7
        %v1068 = vsub.s32 2, %v1067
        %v1069 = vrot.slane %v1023, %v1068
        %v1070 = vlaneseq
        %v1071 = vshrl.u32 %v1070, 7
        %v1072 = vsub.s32 3, %v1071
        %v1073 = vrot.slane %v1023, %v1072
        %v1074 = vlaneseq
        %v1075 = vshrl.u32 %v1074, 7
        %v1076 = vsub.s32 4, %v1075
        %v1077 = vrot.slane %v1023, %v1076
        %v1078 = vlaneseq
        %v1079 = vshrl.u32 %v1078, 7
        %v1080 = vsub.s32 5, %v1079
        %v1081 = vrot.slane %v1023, %v1080
        %v1082 = vlaneseq
        %v1083 = vshrl.u32 %v1082, 7
        %v1084 = vsub.s32 6, %v1083
        %v1085 = vrot.slane %v1023, %v1084
        %v1086 = vlaneseq
        %v1087 = vshrl.u32 %v1086, 7
        %v1088 = vsub.s32 7, %v1087
        %v1089 = vrot.slane %v1023, %v1088
        %v1106 = vsub.f32 %v848, %v1029
        %v1107 = vsub.f32 %v849, %v1033
        %v1108 = vsub.f32 %v850, %v1037
        %v1109 = vsub.f32 %v851, %v1041
        %v1110 = vsub.f32 %v852, %v1045
        %v1111 = vsub.f32 %v853, %v1049
        %v1112 = vsub.f32 %v854, %v1053
        %v1113 = vsub.f32 %v855, %v1057
        %v1114 = vsub.f32 %v856, %v1061
        %v1115 = vsub.f32 %v857, %v1065
        %v1116 = vsub.f32 %v858, %v1069
        %v1117 = vsub.f32 %v859, %v1073
        %v1118 = vsub.f32 %v860, %v1077
        %v1119 = vsub.f32 %v861, %v1081
        %v1120 = vsub.f32 %v862, %v1085
        %v1121 = vsub.f32 %v863, %v1089
        %v1122 = vmul.f32 %v1106, 1.442695
        %v1123 = vpow.pop %v1122
        %v1124 = vmul.f32 %v1107, 1.442695
        %v1125 = vpow.pop %v1124
        %v1126 = vmul.f32 %v1108, 1.442695
        %v1127 = vpow.pop %v1126
        %v1128 = vmul.f32 %v1109, 1.442695
        %v1129 = vpow.pop %v1128
        %v1130 = vmul.f32 %v1110, 1.442695
        %v1131 = vpow.pop %v1130
        %v1132 = vmul.f32 %v1111, 1.442695
        %v1133 = vpow.pop %v1132
        %v1134 = vmul.f32 %v1112, 1.442695
        %v1135 = vpow.pop %v1134
        %v1136 = vmul.f32 %v1113, 1.442695
        %v1137 = vpow.pop %v1136
        %v1138 = vmul.f32 %v1114, 1.442695
        %v1139 = vpow.pop %v1138
        %v1140 = vmul.f32 %v1115, 1.442695
        %v1141 = vpow.pop %v1140
        %v1142 = vmul.f32 %v1116, 1.442695
        %v1143 = vpow.pop %v1142
        %v1144 = vmul.f32 %v1117, 1.442695
        %v1145 = vpow.pop %v1144
        %v1146 = vmul.f32 %v1118, 1.442695
        %v1147 = vpow.pop %v1146
        %v1148 = vmul.f32 %v1119, 1.442695
        %v1149 = vpow.pop %v1148
        %v1150 = vmul.f32 %v1120, 1.442695
        %v1151 = vpow.pop %v1150
        %v1152 = vmul.f32 %v1121, 1.442695
        %v1153 = vpow.pop %v1152
        %v1156 = vlaneseq
        %v1157 = vshrl.u32 %v1156, 7
        %v1158 = vsub.s32 0, %v1157
        %v1159 = vrot.slane %v712, %v1158
        %1161 = vbcast.lane.b32.xlu0 %v1159, 256
        %v1162 = vpop.permute.xlu0 %1161
        %v1163 = vlaneseq
        %v1164 = vshrl.u32 %v1163, 7
        %v1165 = vsub.s32 1, %v1164
        %v1166 = vrot.slane %v712, %v1165
        %1168 = vbcast.lane.b32.xlu0 %v1166, 256
        %v1169 = vpop.permute.xlu0 %1168
        %v1170 = vlaneseq
        %v1171 = vshrl.u32 %v1170, 7
        %v1172 = vsub.s32 2, %v1171
        %v1173 = vrot.slane %v712, %v1172
        %1175 = vbcast.lane.b32.xlu0 %v1173, 256
        %v1176 = vpop.permute.xlu0 %1175
        %v1177 = vlaneseq
        %v1178 = vshrl.u32 %v1177, 7
        %v1179 = vsub.s32 3, %v1178
        %v1180 = vrot.slane %v712, %v1179
        %1182 = vbcast.lane.b32.xlu0 %v1180, 256
        %v1183 = vpop.permute.xlu0 %1182
        %v1184 = vlaneseq
        %v1185 = vshrl.u32 %v1184, 7
        %v1186 = vsub.s32 4, %v1185
        %v1187 = vrot.slane %v712, %v1186
        %1189 = vbcast.lane.b32.xlu0 %v1187, 256
        %v1190 = vpop.permute.xlu0 %1189
        %v1191 = vlaneseq
        %v1192 = vshrl.u32 %v1191, 7
        %v1193 = vsub.s32 5, %v1192
        %v1194 = vrot.slane %v712, %v1193
        %1196 = vbcast.lane.b32.xlu0 %v1194, 256
        %v1197 = vpop.permute.xlu0 %1196
        %v1198 = vlaneseq
        %v1199 = vshrl.u32 %v1198, 7
        %v1200 = vsub.s32 6, %v1199
        %v1201 = vrot.slane %v712, %v1200
        %1203 = vbcast.lane.b32.xlu0 %v1201, 256
        %v1204 = vpop.permute.xlu0 %1203
        %v1205 = vlaneseq
        %v1206 = vshrl.u32 %v1205, 7
        %v1207 = vsub.s32 7, %v1206
        %v1208 = vrot.slane %v712, %v1207
        %1210 = vbcast.lane.b32.xlu0 %v1208, 256
        %v1211 = vpop.permute.xlu0 %1210
        %v1212 = vlaneseq
        %v1213 = vshrl.u32 %v1212, 7
        %v1214 = vsub.s32 0, %v1213
        %v1215 = vrot.slane %v713, %v1214
        %1217 = vbcast.lane.b32.xlu0 %v1215, 256
        %v1218 = vpop.permute.xlu0 %1217
        %v1219 = vlaneseq
        %v1220 = vshrl.u32 %v1219, 7
        %v1221 = vsub.s32 1, %v1220
        %v1222 = vrot.slane %v713, %v1221
        %1224 = vbcast.lane.b32.xlu0 %v1222, 256
        %v1225 = vpop.permute.xlu0 %1224
        %v1226 = vlaneseq
        %v1227 = vshrl.u32 %v1226, 7
        %v1228 = vsub.s32 2, %v1227
        %v1229 = vrot.slane %v713, %v1228
        %1231 = vbcast.lane.b32.xlu0 %v1229, 256
        %v1232 = vpop.permute.xlu0 %1231
        %v1233 = vlaneseq
        %v1234 = vshrl.u32 %v1233, 7
        %v1235 = vsub.s32 3, %v1234
        %v1236 = vrot.slane %v713, %v1235
        %1238 = vbcast.lane.b32.xlu0 %v1236, 256
        %v1239 = vpop.permute.xlu0 %1238
        %v1240 = vlaneseq
        %v1241 = vshrl.u32 %v1240, 7
        %v1242 = vsub.s32 4, %v1241
        %v1243 = vrot.slane %v713, %v1242
        %1245 = vbcast.lane.b32.xlu0 %v1243, 256
        %v1246 = vpop.permute.xlu0 %1245
        %v1247 = vlaneseq
        %v1248 = vshrl.u32 %v1247, 7
        %v1249 = vsub.s32 5, %v1248
        %v1250 = vrot.slane %v713, %v1249
        %1252 = vbcast.lane.b32.xlu0 %v1250, 256
        %v1253 = vpop.permute.xlu0 %1252
        %v1254 = vlaneseq
        %v1255 = vshrl.u32 %v1254, 7
        %v1256 = vsub.s32 6, %v1255
        %v1257 = vrot.slane %v713, %v1256
        %1259 = vbcast.lane.b32.xlu0 %v1257, 256
        %v1260 = vpop.permute.xlu0 %1259
        %v1261 = vlaneseq
        %v1262 = vshrl.u32 %v1261, 7
        %v1263 = vsub.s32 7, %v1262
        %v1264 = vrot.slane %v713, %v1263
        %1266 = vbcast.lane.b32.xlu0 %v1264, 256
        %v1267 = vpop.permute.xlu0 %1266
        %v1284 = vmul.f32 %v1123, %v1162
        %v1285 = vmul.f32 %v1125, %v1169
        %v1286 = vmul.f32 %v1127, %v1176
        %v1287 = vmul.f32 %v1129, %v1183
        %v1288 = vmul.f32 %v1131, %v1190
        %v1289 = vmul.f32 %v1133, %v1197
        %v1290 = vmul.f32 %v1135, %v1204
        %v1291 = vmul.f32 %v1137, %v1211
        %v1292 = vmul.f32 %v1139, %v1218
        %v1293 = vmul.f32 %v1141, %v1225
        %v1294 = vmul.f32 %v1143, %v1232
        %v1295 = vmul.f32 %v1145, %v1239
        %v1296 = vmul.f32 %v1147, %v1246
        %v1297 = vmul.f32 %v1149, %v1253
        %v1298 = vmul.f32 %v1151, %v1260
        %v1299 = vmul.f32 %v1153, %v1267
        %1316 = vset.pattern.permute.xlu0 0
        %1317 = vperm.xlu0 %1316, %v1284
        %v1318 = vpop.permute.xlu0 %1317
        %1319 = vset.pattern.permute.xlu0 0
        %1320 = vperm.xlu0 %1319, %v1285
        %v1321 = vpop.permute.xlu0 %1320
        %1322 = vset.pattern.permute.xlu0 0
        %1323 = vperm.xlu0 %1322, %v1286
        %v1324 = vpop.permute.xlu0 %1323
        %1325 = vset.pattern.permute.xlu0 0
        %1326 = vperm.xlu0 %1325, %v1287
        %v1327 = vpop.permute.xlu0 %1326
        %1328 = vset.pattern.permute.xlu0 0
        %1329 = vperm.xlu0 %1328, %v1288
        %v1330 = vpop.permute.xlu0 %1329
        %1331 = vset.pattern.permute.xlu0 0
        %1332 = vperm.xlu0 %1331, %v1289
        %v1333 = vpop.permute.xlu0 %1332
        %1334 = vset.pattern.permute.xlu0 0
        %1335 = vperm.xlu0 %1334, %v1290
        %v1336 = vpop.permute.xlu0 %1335
        %1337 = vset.pattern.permute.xlu0 0
        %1338 = vperm.xlu0 %1337, %v1291
        %v1339 = vpop.permute.xlu0 %1338
        %1340 = vset.pattern.permute.xlu0 0
        %1341 = vperm.xlu0 %1340, %v1292
        %v1342 = vpop.permute.xlu0 %1341
        %1343 = vset.pattern.permute.xlu0 0
        %1344 = vperm.xlu0 %1343, %v1293
        %v1345 = vpop.permute.xlu0 %1344
        %1346 = vset.pattern.permute.xlu0 0
        %1347 = vperm.xlu0 %1346, %v1294
        %v1348 = vpop.permute.xlu0 %1347
        %1349 = vset.pattern.permute.xlu0 0
        %1350 = vperm.xlu0 %1349, %v1295
        %v1351 = vpop.permute.xlu0 %1350
        %1352 = vset.pattern.permute.xlu0 0
        %1353 = vperm.xlu0 %1352, %v1296
        %v1354 = vpop.permute.xlu0 %1353
        %1355 = vset.pattern.permute.xlu0 0
        %1356 = vperm.xlu0 %1355, %v1297
        %v1357 = vpop.permute.xlu0 %1356
        %1358 = vset.pattern.permute.xlu0 0
        %1359 = vperm.xlu0 %1358, %v1298
        %v1360 = vpop.permute.xlu0 %1359
        %1361 = vset.pattern.permute.xlu0 0
        %1362 = vperm.xlu0 %1361, %v1299
        %v1363 = vpop.permute.xlu0 %1362
        %v1364 = vlaneseq
        %v1365 = vshrl.u32 %v1364, 7
        %v1366 = vsub.s32 %v929, %v1365
        %v1367 = vrot.slane %v1318, %v1366
        %v1368 = vlaneseq
        %v1369 = vshrl.u32 %v1368, 7
        %v1370 = vsub.s32 %v929, %v1369
        %v1371 = vrot.slane %v1321, %v1370
        %v1372 = vlaneseq
        %v1373 = vshrl.u32 %v1372, 7
        %v1374 = vsub.s32 %v929, %v1373
        %v1375 = vrot.slane %v1324, %v1374
        %v1376 = vlaneseq
        %v1377 = vshrl.u32 %v1376, 7
        %v1378 = vsub.s32 %v929, %v1377
        %v1379 = vrot.slane %v1327, %v1378
        %v1380 = vlaneseq
        %v1381 = vshrl.u32 %v1380, 7
        %v1382 = vsub.s32 %v929, %v1381
        %v1383 = vrot.slane %v1330, %v1382
        %v1384 = vlaneseq
        %v1385 = vshrl.u32 %v1384, 7
        %v1386 = vsub.s32 %v929, %v1385
        %v1387 = vrot.slane %v1333, %v1386
        %v1388 = vlaneseq
        %v1389 = vshrl.u32 %v1388, 7
        %v1390 = vsub.s32 %v929, %v1389
        %v1391 = vrot.slane %v1336, %v1390
        %v1392 = vlaneseq
        %v1393 = vshrl.u32 %v1392, 7
        %v1394 = vsub.s32 %v929, %v1393
        %v1395 = vrot.slane %v1339, %v1394
        %v1396 = vlaneseq
        %v1397 = vshrl.u32 %v1396, 7
        %v1398 = vsub.s32 %v929, %v1397
        %v1399 = vrot.slane %v1342, %v1398
        %v1400 = vlaneseq
        %v1401 = vshrl.u32 %v1400, 7
        %v1402 = vsub.s32 %v929, %v1401
        %v1403 = vrot.slane %v1345, %v1402
        %v1404 = vlaneseq
        %v1405 = vshrl.u32 %v1404, 7
        %v1406 = vsub.s32 %v929, %v1405
        %v1407 = vrot.slane %v1348, %v1406
        %v1408 = vlaneseq
        %v1409 = vshrl.u32 %v1408, 7
        %v1410 = vsub.s32 %v929, %v1409
        %v1411 = vrot.slane %v1351, %v1410
        %v1412 = vlaneseq
        %v1413 = vshrl.u32 %v1412, 7
        %v1414 = vsub.s32 %v929, %v1413
        %v1415 = vrot.slane %v1354, %v1414
        %v1416 = vlaneseq
        %v1417 = vshrl.u32 %v1416, 7
        %v1418 = vsub.s32 %v929, %v1417
        %v1419 = vrot.slane %v1357, %v1418
        %v1420 = vlaneseq
        %v1421 = vshrl.u32 %v1420, 7
        %v1422 = vsub.s32 %v929, %v1421
        %v1423 = vrot.slane %v1360, %v1422
        %v1424 = vlaneseq
        %v1425 = vshrl.u32 %v1424, 7
        %v1426 = vsub.s32 %v929, %v1425
        %v1427 = vrot.slane %v1363, %v1426
        %v1428 = vsel %vm994, %v1371, %v1367
        %v1429 = vsel %vm996, %v1375, %v1428
        %v1430 = vsel %vm998, %v1379, %v1429
        %v1431 = vsel %vm1000, %v1383, %v1430
        %v1432 = vsel %vm1002, %v1387, %v1431
        %v1433 = vsel %vm1004, %v1391, %v1432
        %v1434 = vsel %vm1006, %v1395, %v1433
        %v1435 = vsel %vm994, %v1403, %v1399
        %v1436 = vsel %vm996, %v1407, %v1435
        %v1437 = vsel %vm998, %v1411, %v1436
        %v1438 = vsel %vm1000, %v1415, %v1437
        %v1439 = vsel %vm1002, %v1419, %v1438
        %v1440 = vsel %vm1004, %v1423, %v1439
        %v1441 = vsel %vm1006, %v1427, %v1440
        %v1444 = vsel %vm1017, %v1434, 0.0
        %1445 = vadd.xlane.f32.xlu0 %v1444
        %v1446 = vpop.xlane.xlu0 %1445
        %v1447 = vsel %vm1017, %v1441, 0.0
        %1448 = vadd.xlane.f32.xlu0 %v1447
        %v1449 = vpop.xlane.xlu0 %1448
        %v1450 = vrcp.pop %v1446
        %v1451 = vrcp.pop %v1449
        %v1454 = vlaneseq
        %v1455 = vshrl.u32 %v1454, 7
        %v1456 = vsub.s32 0, %v1455
        %v1457 = vrot.slane %v1450, %v1456
        %v1458 = vlaneseq
        %v1459 = vshrl.u32 %v1458, 7
        %v1460 = vsub.s32 1, %v1459
        %v1461 = vrot.slane %v1450, %v1460
        %v1462 = vlaneseq
        %v1463 = vshrl.u32 %v1462, 7
        %v1464 = vsub.s32 2, %v1463
        %v1465 = vrot.slane %v1450, %v1464
        %v1466 = vlaneseq
        %v1467 = vshrl.u32 %v1466, 7
        %v1468 = vsub.s32 3, %v1467
        %v1469 = vrot.slane %v1450, %v1468
        %v1470 = vlaneseq
        %v1471 = vshrl.u32 %v1470, 7
        %v1472 = vsub.s32 4, %v1471
        %v1473 = vrot.slane %v1450, %v1472
        %v1474 = vlaneseq
        %v1475 = vshrl.u32 %v1474, 7
        %v1476 = vsub.s32 5, %v1475
        %v1477 = vrot.slane %v1450, %v1476
        %v1478 = vlaneseq
        %v1479 = vshrl.u32 %v1478, 7
        %v1480 = vsub.s32 6, %v1479
        %v1481 = vrot.slane %v1450, %v1480
        %v1482 = vlaneseq
        %v1483 = vshrl.u32 %v1482, 7
        %v1484 = vsub.s32 7, %v1483
        %v1485 = vrot.slane %v1450, %v1484
        %v1486 = vlaneseq
        %v1487 = vshrl.u32 %v1486, 7
        %v1488 = vsub.s32 0, %v1487
        %v1489 = vrot.slane %v1451, %v1488
        %v1490 = vlaneseq
        %v1491 = vshrl.u32 %v1490, 7
        %v1492 = vsub.s32 1, %v1491
        %v1493 = vrot.slane %v1451, %v1492
        %v1494 = vlaneseq
        %v1495 = vshrl.u32 %v1494, 7
        %v1496 = vsub.s32 2, %v1495
        %v1497 = vrot.slane %v1451, %v1496
        %v1498 = vlaneseq
        %v1499 = vshrl.u32 %v1498, 7
        %v1500 = vsub.s32 3, %v1499
        %v1501 = vrot.slane %v1451, %v1500
        %v1502 = vlaneseq
        %v1503 = vshrl.u32 %v1502, 7
        %v1504 = vsub.s32 4, %v1503
        %v1505 = vrot.slane %v1451, %v1504
        %v1506 = vlaneseq
        %v1507 = vshrl.u32 %v1506, 7
        %v1508 = vsub.s32 5, %v1507
        %v1509 = vrot.slane %v1451, %v1508
        %v1510 = vlaneseq
        %v1511 = vshrl.u32 %v1510, 7
        %v1512 = vsub.s32 6, %v1511
        %v1513 = vrot.slane %v1451, %v1512
        %v1514 = vlaneseq
        %v1515 = vshrl.u32 %v1514, 7
        %v1516 = vsub.s32 7, %v1515
        %v1517 = vrot.slane %v1451, %v1516
        %v1534 = vmul.f32 %v1284, %v1457
        %v1535 = vmul.f32 %v1285, %v1461
        %v1536 = vmul.f32 %v1286, %v1465
        %v1537 = vmul.f32 %v1287, %v1469
        %v1538 = vmul.f32 %v1288, %v1473
        %v1539 = vmul.f32 %v1289, %v1477
        %v1540 = vmul.f32 %v1290, %v1481
        %v1541 = vmul.f32 %v1291, %v1485
        %v1542 = vmul.f32 %v1292, %v1489
        %v1543 = vmul.f32 %v1293, %v1493
        %v1544 = vmul.f32 %v1294, %v1497
        %v1545 = vmul.f32 %v1295, %v1501
        %v1546 = vmul.f32 %v1296, %v1505
        %v1547 = vmul.f32 %v1297, %v1509
        %v1548 = vmul.f32 %v1298, %v1513
        %v1549 = vmul.f32 %v1299, %v1517
        %v1550 = vlaneseq
        %v1551 = vshrl.u32 %v1550, 7
        %v1552 = vsub.s32 2, %v1551
        %v1553 = vrot.slane %v309, %v1552
        %1562 = vset.pattern.permute.xlu0 0
        %1563 = vperm.xlu0 %1562, %v1534
        %v1564 = vpop.permute.xlu0 %1563
        %1565 = vset.pattern.permute.xlu0 0
        %1566 = vperm.xlu0 %1565, %v1535
        %v1567 = vpop.permute.xlu0 %1566
        %1568 = vset.pattern.permute.xlu0 0
        %1569 = vperm.xlu0 %1568, %v1536
        %v1570 = vpop.permute.xlu0 %1569
        %1571 = vset.pattern.permute.xlu0 0
        %1572 = vperm.xlu0 %1571, %v1537
        %v1573 = vpop.permute.xlu0 %1572
        %1574 = vset.pattern.permute.xlu0 0
        %1575 = vperm.xlu0 %1574, %v1538
        %v1576 = vpop.permute.xlu0 %1575
        %1577 = vset.pattern.permute.xlu0 0
        %1578 = vperm.xlu0 %1577, %v1539
        %v1579 = vpop.permute.xlu0 %1578
        %1580 = vset.pattern.permute.xlu0 0
        %1581 = vperm.xlu0 %1580, %v1540
        %v1582 = vpop.permute.xlu0 %1581
        %1583 = vset.pattern.permute.xlu0 0
        %1584 = vperm.xlu0 %1583, %v1541
        %v1585 = vpop.permute.xlu0 %1584
        %v1586 = vlaneseq
        %v1587 = vshrl.u32 %v1586, 7
        %v1588 = vsub.s32 %v929, %v1587
        %v1589 = vrot.slane %v1564, %v1588
        %v1590 = vlaneseq
        %v1591 = vshrl.u32 %v1590, 7
        %v1592 = vsub.s32 %v929, %v1591
        %v1593 = vrot.slane %v1567, %v1592
        %v1594 = vlaneseq
        %v1595 = vshrl.u32 %v1594, 7
        %v1596 = vsub.s32 %v929, %v1595
        %v1597 = vrot.slane %v1570, %v1596
        %v1598 = vlaneseq
        %v1599 = vshrl.u32 %v1598, 7
        %v1600 = vsub.s32 %v929, %v1599
        %v1601 = vrot.slane %v1573, %v1600
        %v1602 = vlaneseq
        %v1603 = vshrl.u32 %v1602, 7
        %v1604 = vsub.s32 %v929, %v1603
        %v1605 = vrot.slane %v1576, %v1604
        %v1606 = vlaneseq
        %v1607 = vshrl.u32 %v1606, 7
        %v1608 = vsub.s32 %v929, %v1607
        %v1609 = vrot.slane %v1579, %v1608
        %v1610 = vlaneseq
        %v1611 = vshrl.u32 %v1610, 7
        %v1612 = vsub.s32 %v929, %v1611
        %v1613 = vrot.slane %v1582, %v1612
        %v1614 = vlaneseq
        %v1615 = vshrl.u32 %v1614, 7
        %v1616 = vsub.s32 %v929, %v1615
        %v1617 = vrot.slane %v1585, %v1616
        %v1618 = vsel %vm994, %v1593, %v1589
        %v1619 = vsel %vm996, %v1597, %v1618
        %v1620 = vsel %vm998, %v1601, %v1619
        %v1621 = vsel %vm1000, %v1605, %v1620
        %v1622 = vsel %vm1002, %v1609, %v1621
        %v1623 = vsel %vm1004, %v1613, %v1622
        %v1624 = vsel %vm1006, %v1617, %v1623
        %v1625 = vsel %vm1017, %v1624, 0
        %1627 = vmatprep.subr.mxu0 0.0
        %1628 = vmatpush1.msra.mxu0 %v391
        %1629 = vmatprep.subr.mxu0 0.0
        %1630 = vmatpush1.msra.mxu0 0.0
        %1631 = vmatprep.subr.mxu0 0.0
        %1632 = vmatpush1.msra.mxu0 0.0
        %1633 = vmatprep.subr.mxu0 0.0
        %1634 = vmatpush1.msra.mxu0 0.0
        %1635 = vmatprep.subr.mxu0 0.0
        %1636 = vmatpush1.msra.mxu0 0.0
        %1637 = vmatprep.subr.mxu0 0.0
        %1638 = vmatpush1.msra.mxu0 0.0
        %1639 = vmatprep.subr.mxu0 0.0
        %1640 = vmatpush1.msra.mxu0 0.0
        %1641 = vmatprep.subr.mxu0 0.0
        %1642 = vmatpush1.msra.mxu0 0.0
        %1643 = vmatprep.subr.mxu0 0.0
        %1644 = vmatpush1.msra.mxu0 0.0
        %1645 = vmatprep.subr.mxu0 0.0
        %1646 = vmatpush1.msra.mxu0 0.0
        %1647 = vmatprep.subr.mxu0 0.0
        %1648 = vmatpush1.msra.mxu0 0.0
        %1649 = vmatprep.subr.mxu0 0.0
        %1650 = vmatpush1.msra.mxu0 0.0
        %1651 = vmatprep.subr.mxu0 0.0
        %1652 = vmatpush1.msra.mxu0 0.0
        %1653 = vmatprep.subr.mxu0 0.0
        %1654 = vmatpush1.msra.mxu0 0.0
        %1655 = vmatprep.subr.mxu0 0.0
        %1656 = vmatpush1.msra.mxu0 0.0
        %1657 = vmatprep.subr.mxu0 0.0
        %1658 = vmatpush1.msra.mxu0 0.0
        %1659 = vmatprep.subr.mxu0 0.0
        %1660 = vmatpush1.msra.mxu0 0.0
        %1661 = vmatprep.subr.mxu0 0.0
        %1662 = vmatpush1.msra.mxu0 0.0
        %1663 = vmatprep.subr.mxu0 0.0
        %1664 = vmatpush1.msra.mxu0 0.0
        %1665 = vmatprep.subr.mxu0 0.0
        %1666 = vmatpush1.msra.mxu0 0.0
        %1667 = vmatprep.subr.mxu0 0.0
        %1668 = vmatpush1.msra.mxu0 0.0
        %1669 = vmatprep.subr.mxu0 0.0
        %1670 = vmatpush1.msra.mxu0 0.0
        %1671 = vmatprep.subr.mxu0 0.0
        %1672 = vmatpush1.msra.mxu0 0.0
        %1673 = vmatprep.subr.mxu0 0.0
        %1674 = vmatpush1.msra.mxu0 0.0
        %1675 = vmatprep.subr.mxu0 0.0
        %1676 = vmatpush1.msra.mxu0 0.0
        %1677 = vmatprep.subr.mxu0 0.0
        %1678 = vmatpush1.msra.mxu0 0.0
        %1679 = vmatprep.subr.mxu0 0.0
        %1680 = vmatpush1.msra.mxu0 0.0
        %1681 = vmatprep.subr.mxu0 0.0
        %1682 = vmatpush1.msra.mxu0 0.0
        %1683 = vmatprep.subr.mxu0 0.0
        %1684 = vmatpush1.msra.mxu0 0.0
        %1685 = vmatprep.subr.mxu0 0.0
        %1686 = vmatpush1.msra.mxu0 0.0
        %1687 = vmatprep.subr.mxu0 0.0
        %1688 = vmatpush1.msra.mxu0 0.0
        %1689 = vmatprep.subr.mxu0 0.0
        %1690 = vmatpush1.msra.mxu0 0.0
        %1691 = vmatprep.mubr.f32.mxu0 0.0
        %1692 = vmatmul.mubr.f32.gmra.mrb[0].mxu0 %v1625
        %v1693 = vpop.f32.mrb[0].mxu0
        %v1694 = vadd.f32 %v1553, %v1693
        %v1695 = vpop.f32.mrb[0].mxu0
        %1696 = vdwg.mxu0
        %1705 = vset.pattern.permute.xlu0 0
        %1706 = vperm.xlu0 %1705, %v1542
        %v1707 = vpop.permute.xlu0 %1706
        %1708 = vset.pattern.permute.xlu0 0
        %1709 = vperm.xlu0 %1708, %v1543
        %v1710 = vpop.permute.xlu0 %1709
        %1711 = vset.pattern.permute.xlu0 0
        %1712 = vperm.xlu0 %1711, %v1544
        %v1713 = vpop.permute.xlu0 %1712
        %1714 = vset.pattern.permute.xlu0 0
        %1715 = vperm.xlu0 %1714, %v1545
        %v1716 = vpop.permute.xlu0 %1715
        %1717 = vset.pattern.permute.xlu0 0
        %1718 = vperm.xlu0 %1717, %v1546
        %v1719 = vpop.permute.xlu0 %1718
        %1720 = vset.pattern.permute.xlu0 0
        %1721 = vperm.xlu0 %1720, %v1547
        %v1722 = vpop.permute.xlu0 %1721
        %1723 = vset.pattern.permute.xlu0 0
        %1724 = vperm.xlu0 %1723, %v1548
        %v1725 = vpop.permute.xlu0 %1724
        %1726 = vset.pattern.permute.xlu0 0
        %1727 = vperm.xlu0 %1726, %v1549
        %v1728 = vpop.permute.xlu0 %1727
        %v1729 = vlaneseq
        %v1730 = vshrl.u32 %v1729, 7
        %v1731 = vsub.s32 %v929, %v1730
        %v1732 = vrot.slane %v1707, %v1731
        %v1733 = vlaneseq
        %v1734 = vshrl.u32 %v1733, 7
        %v1735 = vsub.s32 %v929, %v1734
        %v1736 = vrot.slane %v1710, %v1735
        %v1737 = vlaneseq
        %v1738 = vshrl.u32 %v1737, 7
        %v1739 = vsub.s32 %v929, %v1738
        %v1740 = vrot.slane %v1713, %v1739
        %v1741 = vlaneseq
        %v1742 = vshrl.u32 %v1741, 7
        %v1743 = vsub.s32 %v929, %v1742
        %v1744 = vrot.slane %v1716, %v1743
        %v1745 = vlaneseq
        %v1746 = vshrl.u32 %v1745, 7
        %v1747 = vsub.s32 %v929, %v1746
        %v1748 = vrot.slane %v1719, %v1747
        %v1749 = vlaneseq
        %v1750 = vshrl.u32 %v1749, 7
        %v1751 = vsub.s32 %v929, %v1750
        %v1752 = vrot.slane %v1722, %v1751
        %v1753 = vlaneseq
        %v1754 = vshrl.u32 %v1753, 7
        %v1755 = vsub.s32 %v929, %v1754
        %v1756 = vrot.slane %v1725, %v1755
        %v1757 = vlaneseq
        %v1758 = vshrl.u32 %v1757, 7
        %v1759 = vsub.s32 %v929, %v1758
        %v1760 = vrot.slane %v1728, %v1759
        %v1761 = vsel %vm994, %v1736, %v1732
        %v1762 = vsel %vm996, %v1740, %v1761
        %v1763 = vsel %vm998, %v1744, %v1762
        %v1764 = vsel %vm1000, %v1748, %v1763
        %v1765 = vsel %vm1002, %v1752, %v1764
        %v1766 = vsel %vm1004, %v1756, %v1765
        %v1767 = vsel %vm1006, %v1760, %v1766
        %v1768 = vsel %vm1017, %v1767, 0
        %1770 = vmatprep.subr.mxu0 0.0
        %1771 = vmatpush1.msra.mxu0 %v396
        %1772 = vmatprep.subr.mxu0 0.0
        %1773 = vmatpush1.msra.mxu0 0.0
        %1774 = vmatprep.subr.mxu0 0.0
        %1775 = vmatpush1.msra.mxu0 0.0
        %1776 = vmatprep.subr.mxu0 0.0
        %1777 = vmatpush1.msra.mxu0 0.0
        %1778 = vmatprep.subr.mxu0 0.0
        %1779 = vmatpush1.msra.mxu0 0.0
        %1780 = vmatprep.subr.mxu0 0.0
        %1781 = vmatpush1.msra.mxu0 0.0
        %1782 = vmatprep.subr.mxu0 0.0
        %1783 = vmatpush1.msra.mxu0 0.0
        %1784 = vmatprep.subr.mxu0 0.0
        %1785 = vmatpush1.msra.mxu0 0.0
        %1786 = vmatprep.subr.mxu0 0.0
        %1787 = vmatpush1.msra.mxu0 0.0
        %1788 = vmatprep.subr.mxu0 0.0
        %1789 = vmatpush1.msra.mxu0 0.0
        %1790 = vmatprep.subr.mxu0 0.0
        %1791 = vmatpush1.msra.mxu0 0.0
        %1792 = vmatprep.subr.mxu0 0.0
        %1793 = vmatpush1.msra.mxu0 0.0
        %1794 = vmatprep.subr.mxu0 0.0
        %1795 = vmatpush1.msra.mxu0 0.0
        %1796 = vmatprep.subr.mxu0 0.0
        %1797 = vmatpush1.msra.mxu0 0.0
        %1798 = vmatprep.subr.mxu0 0.0
        %1799 = vmatpush1.msra.mxu0 0.0
        %1800 = vmatprep.subr.mxu0 0.0
        %1801 = vmatpush1.msra.mxu0 0.0
        %1802 = vmatprep.subr.mxu0 0.0
        %1803 = vmatpush1.msra.mxu0 0.0
        %1804 = vmatprep.subr.mxu0 0.0
        %1805 = vmatpush1.msra.mxu0 0.0
        %1806 = vmatprep.subr.mxu0 0.0
        %1807 = vmatpush1.msra.mxu0 0.0
        %1808 = vmatprep.subr.mxu0 0.0
        %1809 = vmatpush1.msra.mxu0 0.0
        %1810 = vmatprep.subr.mxu0 0.0
        %1811 = vmatpush1.msra.mxu0 0.0
        %1812 = vmatprep.subr.mxu0 0.0
        %1813 = vmatpush1.msra.mxu0 0.0
        %1814 = vmatprep.subr.mxu0 0.0
        %1815 = vmatpush1.msra.mxu0 0.0
        %1816 = vmatprep.subr.mxu0 0.0
        %1817 = vmatpush1.msra.mxu0 0.0
        %1818 = vmatprep.subr.mxu0 0.0
        %1819 = vmatpush1.msra.mxu0 0.0
        %1820 = vmatprep.subr.mxu0 0.0
        %1821 = vmatpush1.msra.mxu0 0.0
        %1822 = vmatprep.subr.mxu0 0.0
        %1823 = vmatpush1.msra.mxu0 0.0
        %1824 = vmatprep.subr.mxu0 0.0
        %1825 = vmatpush1.msra.mxu0 0.0
        %1826 = vmatprep.subr.mxu0 0.0
        %1827 = vmatpush1.msra.mxu0 0.0
        %1828 = vmatprep.subr.mxu0 0.0
        %1829 = vmatpush1.msra.mxu0 0.0
        %1830 = vmatprep.subr.mxu0 0.0
        %1831 = vmatpush1.msra.mxu0 0.0
        %1832 = vmatprep.subr.mxu0 0.0
        %1833 = vmatpush1.msra.mxu0 0.0
        %1834 = vmatprep.mubr.f32.mxu0 0.0
        %1835 = vmatmul.mubr.f32.gmra.mrb[0].mxu0 %v1768
        %v1836 = vpop.f32.mrb[0].mxu0
        %v1837 = vadd.f32 %v1553, %v1836
        %v1838 = vpop.f32.mrb[0].mxu0
        %1839 = vdwg.mxu0
        %v1840 = vsel %vm663, %v1694, 0.0
        %v1841 = vrot.slane %v1840, 4
        %v1842 = vadd.f32 %v1840, %v1841
        %v1843 = vrot.slane %v1842, 2
        %v1844 = vadd.f32 %v1842, %v1843
        %v1845 = vrot.slane %v1844, 1
        %v1846 = vadd.f32 %v1844, %v1845
        %v1847 = vsel %vm663, %v1837, 0.0
        %v1848 = vrot.slane %v1847, 4
        %v1849 = vadd.f32 %v1847, %v1848
        %v1850 = vrot.slane %v1849, 2
        %v1851 = vadd.f32 %v1849, %v1850
        %v1852 = vrot.slane %v1851, 1
        %v1853 = vadd.f32 %v1851, %v1852
        %v1854 = vrcp.pop 8.0
        %v1855 = vmul.f32 %v1846, %v1854
        %v1856 = vmul.f32 %v1853, %v1854
        %v1857 = vsub.f32 %v1694, %v1855
        %v1858 = vsub.f32 %v1837, %v1856
        %v1859 = vmul.f32 %v1857, %v1857
        %v1860 = vmul.f32 %v1858, %v1858
        %v1861 = vsel %vm663, %v1859, 0.0
        %v1862 = vrot.slane %v1861, 4
        %v1863 = vadd.f32 %v1861, %v1862
        %v1864 = vrot.slane %v1863, 2
        %v1865 = vadd.f32 %v1863, %v1864
        %v1866 = vrot.slane %v1865, 1
        %v1867 = vadd.f32 %v1865, %v1866
        %v1868 = vsel %vm663, %v1860, 0.0
        %v1869 = vrot.slane %v1868, 4
        %v1870 = vadd.f32 %v1868, %v1869
        %v1871 = vrot.slane %v1870, 2
        %v1872 = vadd.f32 %v1870, %v1871
        %v1873 = vrot.slane %v1872, 1
        %v1874 = vadd.f32 %v1872, %v1873
        %v1875 = vmul.f32 %v1867, %v1854
        %v1876 = vmul.f32 %v1874, %v1854
        %v1877 = vadd.f32 %v1875, 1e-05
        %v1878 = vadd.f32 %v1876, 1e-05
        %v1879 = vrsqrt.pop %v1877
        %v1880 = vrsqrt.pop %v1878
        %v1881 = vmul.f32 %v1857, %v1879
        %v1882 = vmul.f32 %v1858, %v1880
        %v1883 = vlaneseq
        %v1884 = vshrl.u32 %v1883, 7
        %v1885 = vsub.s32 3, %v1884
        %v1886 = vrot.slane %v309, %v1885
        %v1887 = vmul.f32 %v1881, %v1886
        %v1888 = vmul.f32 %v1882, %v1886
        %v1889 = vlaneseq
        %v1890 = vshrl.u32 %v1889, 7
        %v1891 = vsub.s32 4, %v1890
        %v1892 = vrot.slane %v309, %v1891
        %v1893 = vadd.f32 %v1887, %v1892
        %v1894 = vadd.f32 %v1888, %v1892
        %v1895 = vld [vmem:[%s249] sm:$0xff]
        %v1896 = vld [vmem:[%s249 + $0x8] sm:$0xff]
        %v1897 = vsel %vm1017, %v1895, 0.0
        %v1898 = vrot.slane %v1897, 4
        %v1899 = vadd.f32 %v1897, %v1898
        %v1900 = vrot.slane %v1899, 2
        %v1901 = vadd.f32 %v1899, %v1900
        %v1902 = vrot.slane %v1901, 1
        %v1903 = vadd.f32 %v1901, %v1902
        %v1904 = vsel %vm1017, %v1896, 0.0
        %v1905 = vrot.slane %v1904, 4
        %v1906 = vadd.f32 %v1904, %v1905
        %v1907 = vrot.slane %v1906, 2
        %v1908 = vadd.f32 %v1906, %v1907
        %v1909 = vrot.slane %v1908, 1
        %v1910 = vadd.f32 %v1908, %v1909
        %v1911 = vmul.f32 %v1903, %v1854
        %v1912 = vmul.f32 %v1910, %v1854
        %v1913 = vsub.f32 %v1895, %v1911
        %v1914 = vsub.f32 %v1896, %v1912
        %v1915 = vmul.f32 %v1913, %v1913
        %v1916 = vmul.f32 %v1914, %v1914
        %v1917 = vsel %vm1017, %v1915, 0.0
        %v1918 = vrot.slane %v1917, 4
        %v1919 = vadd.f32 %v1917, %v1918
        %v1920 = vrot.slane %v1919, 2
        %v1921 = vadd.f32 %v1919, %v1920
        %v1922 = vrot.slane %v1921, 1
        %v1923 = vadd.f32 %v1921, %v1922
        %v1924 = vsel %vm1017, %v1916, 0.0
        %v1925 = vrot.slane %v1924, 4
        %v1926 = vadd.f32 %v1924, %v1925
        %v1927 = vrot.slane %v1926, 2
        %v1928 = vadd.f32 %v1926, %v1927
        %v1929 = vrot.slane %v1928, 1
        %v1930 = vadd.f32 %v1928, %v1929
        %v1931 = vmul.f32 %v1923, %v1854
        %v1932 = vmul.f32 %v1930, %v1854
        %v1933 = vadd.f32 %v1931, 1e-05
        %v1934 = vadd.f32 %v1932, 1e-05
        %v1935 = vrsqrt.pop %v1933
        %v1936 = vrsqrt.pop %v1934
        %v1937 = vmul.f32 %v1913, %v1935
        %v1938 = vmul.f32 %v1914, %v1936
        %v1939 = vlaneseq
        %v1940 = vshrl.u32 %v1939, 7
        %v1941 = vsub.s32 5, %v1940
        %v1942 = vrot.slane %v309, %v1941
        %v1943 = vmul.f32 %v1937, %v1942
        %v1944 = vmul.f32 %v1938, %v1942
        %v1945 = vlaneseq
        %v1946 = vshrl.u32 %v1945, 7
        %v1947 = vsub.s32 6, %v1946
        %v1948 = vrot.slane %v309, %v1947
        %v1949 = vadd.f32 %v1943, %v1948
        %v1950 = vadd.f32 %v1944, %v1948
        %vm1953 = vcmask 1043456
        %v1954 = vrot.slane %v306, 4
        %v1955 = vrot.slane %v307, 4
        %v1956 = vsel %vm1953, %v1954, %v1955
        %v1959 = vsel %vm1017, %v1949, 0
        %v1962 = vsel %vm1017, %v1950, 0
        %1964 = vmatprep.subr.mxu0 0.0
        %1965 = vmatpush1.msra.mxu0 %v1956
        %1966 = vmatprep.subr.mxu0 0.0
        %1967 = vmatpush1.msra.mxu0 0.0
        %1968 = vmatprep.subr.mxu0 0.0
        %1969 = vmatpush1.msra.mxu0 0.0
        %1970 = vmatprep.subr.mxu0 0.0
        %1971 = vmatpush1.msra.mxu0 0.0
        %1972 = vmatprep.subr.mxu0 0.0
        %1973 = vmatpush1.msra.mxu0 0.0
        %1974 = vmatprep.subr.mxu0 0.0
        %1975 = vmatpush1.msra.mxu0 0.0
        %1976 = vmatprep.subr.mxu0 0.0
        %1977 = vmatpush1.msra.mxu0 0.0
        %1978 = vmatprep.subr.mxu0 0.0
        %1979 = vmatpush1.msra.mxu0 0.0
        %1980 = vmatprep.subr.mxu0 0.0
        %1981 = vmatpush1.msra.mxu0 0.0
        %1982 = vmatprep.subr.mxu0 0.0
        %1983 = vmatpush1.msra.mxu0 0.0
        %1984 = vmatprep.subr.mxu0 0.0
        %1985 = vmatpush1.msra.mxu0 0.0
        %1986 = vmatprep.subr.mxu0 0.0
        %1987 = vmatpush1.msra.mxu0 0.0
        %1988 = vmatprep.subr.mxu0 0.0
        %1989 = vmatpush1.msra.mxu0 0.0
        %1990 = vmatprep.subr.mxu0 0.0
        %1991 = vmatpush1.msra.mxu0 0.0
        %1992 = vmatprep.subr.mxu0 0.0
        %1993 = vmatpush1.msra.mxu0 0.0
        %1994 = vmatprep.subr.mxu0 0.0
        %1995 = vmatpush1.msra.mxu0 0.0
        %1996 = vmatprep.subr.mxu0 0.0
        %1997 = vmatpush1.msra.mxu0 0.0
        %1998 = vmatprep.subr.mxu0 0.0
        %1999 = vmatpush1.msra.mxu0 0.0
        %2000 = vmatprep.subr.mxu0 0.0
        %2001 = vmatpush1.msra.mxu0 0.0
        %2002 = vmatprep.subr.mxu0 0.0
        %2003 = vmatpush1.msra.mxu0 0.0
        %2004 = vmatprep.subr.mxu0 0.0
        %2005 = vmatpush1.msra.mxu0 0.0
        %2006 = vmatprep.subr.mxu0 0.0
        %2007 = vmatpush1.msra.mxu0 0.0
        %2008 = vmatprep.subr.mxu0 0.0
        %2009 = vmatpush1.msra.mxu0 0.0
        %2010 = vmatprep.subr.mxu0 0.0
        %2011 = vmatpush1.msra.mxu0 0.0
        %2012 = vmatprep.subr.mxu0 0.0
        %2013 = vmatpush1.msra.mxu0 0.0
        %2014 = vmatprep.subr.mxu0 0.0
        %2015 = vmatpush1.msra.mxu0 0.0
        %2016 = vmatprep.subr.mxu0 0.0
        %2017 = vmatpush1.msra.mxu0 0.0
        %2018 = vmatprep.subr.mxu0 0.0
        %2019 = vmatpush1.msra.mxu0 0.0
        %2020 = vmatprep.subr.mxu0 0.0
        %2021 = vmatpush1.msra.mxu0 0.0
        %2022 = vmatprep.subr.mxu0 0.0
        %2023 = vmatpush1.msra.mxu0 0.0
        %2024 = vmatprep.subr.mxu0 0.0
        %2025 = vmatpush1.msra.mxu0 0.0
        %2026 = vmatprep.subr.mxu0 0.0
        %2027 = vmatpush1.msra.mxu0 0.0
        %2028 = vmatprep.mubr.f32.mxu0 0.0
        %2029 = vmatmul.mubr.f32.gmra.mrb[0].mxu0 %v1959
        %v2030 = vpop.f32.mrb[0].mxu0
        %v2031 = vadd.f32 0.0, %v2030
        %v2032 = vpop.f32.mrb[0].mxu0
        %2033 = vmatprep.mubr.f32.mxu0 0.0
        %2034 = vmatmul.mubr.f32.gmra.mrb[0].mxu0 %v1962
        %v2035 = vpop.f32.mrb[0].mxu0
        %v2036 = vadd.f32 0.0, %v2035
        %v2037 = vpop.f32.mrb[0].mxu0
        %2038 = vdwg.mxu0
        %v2040 = vsel %vm663, %v1893, 0
        %v2043 = vsel %vm663, %v1894, 0
        %v2045 = vsel %vm1953, %v306, 0
        %2047 = vmatprep.subr.mxu0 0.0
        %2048 = vmatpush1.msra.mxu0 %v305
        %2049 = vmatprep.subr.mxu0 0.0
        %2050 = vmatpush1.msra.mxu0 %v2045
        %2051 = vmatprep.subr.mxu0 0.0
        %2052 = vmatpush1.msra.mxu0 0.0
        %2053 = vmatprep.subr.mxu0 0.0
        %2054 = vmatpush1.msra.mxu0 0.0
        %2055 = vmatprep.subr.mxu0 0.0
        %2056 = vmatpush1.msra.mxu0 0.0
        %2057 = vmatprep.subr.mxu0 0.0
        %2058 = vmatpush1.msra.mxu0 0.0
        %2059 = vmatprep.subr.mxu0 0.0
        %2060 = vmatpush1.msra.mxu0 0.0
        %2061 = vmatprep.subr.mxu0 0.0
        %2062 = vmatpush1.msra.mxu0 0.0
        %2063 = vmatprep.subr.mxu0 0.0
        %2064 = vmatpush1.msra.mxu0 0.0
        %2065 = vmatprep.subr.mxu0 0.0
        %2066 = vmatpush1.msra.mxu0 0.0
        %2067 = vmatprep.subr.mxu0 0.0
        %2068 = vmatpush1.msra.mxu0 0.0
        %2069 = vmatprep.subr.mxu0 0.0
        %2070 = vmatpush1.msra.mxu0 0.0
        %2071 = vmatprep.subr.mxu0 0.0
        %2072 = vmatpush1.msra.mxu0 0.0
        %2073 = vmatprep.subr.mxu0 0.0
        %2074 = vmatpush1.msra.mxu0 0.0
        %2075 = vmatprep.subr.mxu0 0.0
        %2076 = vmatpush1.msra.mxu0 0.0
        %2077 = vmatprep.subr.mxu0 0.0
        %2078 = vmatpush1.msra.mxu0 0.0
        %2079 = vmatprep.subr.mxu0 0.0
        %2080 = vmatpush1.msra.mxu0 0.0
        %2081 = vmatprep.subr.mxu0 0.0
        %2082 = vmatpush1.msra.mxu0 0.0
        %2083 = vmatprep.subr.mxu0 0.0
        %2084 = vmatpush1.msra.mxu0 0.0
        %2085 = vmatprep.subr.mxu0 0.0
        %2086 = vmatpush1.msra.mxu0 0.0
        %2087 = vmatprep.subr.mxu0 0.0
        %2088 = vmatpush1.msra.mxu0 0.0
        %2089 = vmatprep.subr.mxu0 0.0
        %2090 = vmatpush1.msra.mxu0 0.0
        %2091 = vmatprep.subr.mxu0 0.0
        %2092 = vmatpush1.msra.mxu0 0.0
        %2093 = vmatprep.subr.mxu0 0.0
        %2094 = vmatpush1.msra.mxu0 0.0
        %2095 = vmatprep.subr.mxu0 0.0
        %2096 = vmatpush1.msra.mxu0 0.0
        %2097 = vmatprep.subr.mxu0 0.0
        %2098 = vmatpush1.msra.mxu0 0.0
        %2099 = vmatprep.subr.mxu0 0.0
        %2100 = vmatpush1.msra.mxu0 0.0
        %2101 = vmatprep.subr.mxu0 0.0
        %2102 = vmatpush1.msra.mxu0 0.0
        %2103 = vmatprep.subr.mxu0 0.0
        %2104 = vmatpush1.msra.mxu0 0.0
        %2105 = vmatprep.subr.mxu0 0.0
        %2106 = vmatpush1.msra.mxu0 0.0
        %2107 = vmatprep.subr.mxu0 0.0
        %2108 = vmatpush1.msra.mxu0 0.0
        %2109 = vmatprep.subr.mxu0 0.0
        %2110 = vmatpush1.msra.mxu0 0.0
        %2111 = vmatprep.mubr.f32.mxu0 0.0
        %2112 = vmatmul.mubr.f32.gmra.mrb[0].mxu0 %v2040
        %v2113 = vpop.f32.mrb[0].mxu0
        %v2114 = vadd.f32 %v2031, %v2113
        %v2115 = vpop.f32.mrb[0].mxu0
        %2116 = vmatprep.mubr.f32.mxu0 0.0
        %2117 = vmatmul.mubr.f32.gmra.mrb[0].mxu0 %v2043
        %v2118 = vpop.f32.mrb[0].mxu0
        %v2119 = vadd.f32 %v2036, %v2118
        %v2120 = vpop.f32.mrb[0].mxu0
        %2121 = vdwg.mxu0
        %v2122 = vmax.f32 %v2114, 0.0
        %v2123 = vmax.f32 %v2119, 0.0
        %v2124 = vsel %vm663, %v2122, 0.0
        %v2125 = vrot.slane %v2124, 4
        %v2126 = vadd.f32 %v2124, %v2125
        %v2127 = vrot.slane %v2126, 2
        %v2128 = vadd.f32 %v2126, %v2127
        %v2129 = vrot.slane %v2128, 1
        %v2130 = vadd.f32 %v2128, %v2129
        %v2131 = vsel %vm663, %v2123, 0.0
        %v2132 = vrot.slane %v2131, 4
        %v2133 = vadd.f32 %v2131, %v2132
        %v2134 = vrot.slane %v2133, 2
        %v2135 = vadd.f32 %v2133, %v2134
        %v2136 = vrot.slane %v2135, 1
        %v2137 = vadd.f32 %v2135, %v2136
        %v2138 = vmul.f32 %v2130, %v1854
        %v2139 = vmul.f32 %v2137, %v1854
        %v2140 = vsub.f32 %v2122, %v2138
        %v2141 = vsub.f32 %v2123, %v2139
        %v2142 = vmul.f32 %v2140, %v2140
        %v2143 = vmul.f32 %v2141, %v2141
        %v2144 = vsel %vm663, %v2142, 0.0
        %v2145 = vrot.slane %v2144, 4
        %v2146 = vadd.f32 %v2144, %v2145
        %v2147 = vrot.slane %v2146, 2
        %v2148 = vadd.f32 %v2146, %v2147
        %v2149 = vrot.slane %v2148, 1
        %v2150 = vadd.f32 %v2148, %v2149
        %v2151 = vsel %vm663, %v2143, 0.0
        %v2152 = vrot.slane %v2151, 4
        %v2153 = vadd.f32 %v2151, %v2152
        %v2154 = vrot.slane %v2153, 2
        %v2155 = vadd.f32 %v2153, %v2154
        %v2156 = vrot.slane %v2155, 1
        %v2157 = vadd.f32 %v2155, %v2156
        %v2158 = vmul.f32 %v2150, %v1854
        %v2159 = vmul.f32 %v2157, %v1854
        %v2160 = vadd.f32 %v2158, 1e-05
        %v2161 = vadd.f32 %v2159, 1e-05
        %v2162 = vrsqrt.pop %v2160
        %v2163 = vrsqrt.pop %v2161
        %v2164 = vmul.f32 %v2140, %v2162
        %v2165 = vmul.f32 %v2141, %v2163
        %v2166 = vlaneseq
        %v2167 = vshrl.u32 %v2166, 7
        %v2168 = vsub.s32 7, %v2167
        %v2169 = vrot.slane %v309, %v2168
        %v2170 = vmul.f32 %v2164, %v2169
        %v2171 = vmul.f32 %v2165, %v2169
        %v2172 = vlaneseq
        %v2173 = vshrl.u32 %v2172, 7
        %v2174 = vsub.s32 0, %v2173
        %v2175 = vrot.slane %v310, %v2174
        %v2176 = vadd.f32 %v2170, %v2175
        %v2177 = vadd.f32 %v2171, %v2175
        %v2178 = vlaneseq
        %v2179 = vshrl.u32 %v2178, 7
        %v2180 = vsub.s32 1, %v2179
        %v2181 = vrot.slane %v310, %v2180
        %v2183 = vrot.slane %v308, 4
        %v2184 = vsel %vm1953, %v1955, %v2183
        %v2187 = vsel %vm663, %v2176, 0
        %v2190 = vsel %vm663, %v2177, 0
        %v2192 = vsel %vm1953, %v2183, 0
        %2194 = vmatprep.subr.mxu0 0.0
        %2195 = vmatpush1.msra.mxu0 %v2184
        %2196 = vmatprep.subr.mxu0 0.0
        %2197 = vmatpush1.msra.mxu0 %v2192
        %2198 = vmatprep.subr.mxu0 0.0
        %2199 = vmatpush1.msra.mxu0 0.0
        %2200 = vmatprep.subr.mxu0 0.0
        %2201 = vmatpush1.msra.mxu0 0.0
        %2202 = vmatprep.subr.mxu0 0.0
        %2203 = vmatpush1.msra.mxu0 0.0
        %2204 = vmatprep.subr.mxu0 0.0
        %2205 = vmatpush1.msra.mxu0 0.0
        %2206 = vmatprep.subr.mxu0 0.0
        %2207 = vmatpush1.msra.mxu0 0.0
        %2208 = vmatprep.subr.mxu0 0.0
        %2209 = vmatpush1.msra.mxu0 0.0
        %2210 = vmatprep.subr.mxu0 0.0
        %2211 = vmatpush1.msra.mxu0 0.0
        %2212 = vmatprep.subr.mxu0 0.0
        %2213 = vmatpush1.msra.mxu0 0.0
        %2214 = vmatprep.subr.mxu0 0.0
        %2215 = vmatpush1.msra.mxu0 0.0
        %2216 = vmatprep.subr.mxu0 0.0
        %2217 = vmatpush1.msra.mxu0 0.0
        %2218 = vmatprep.subr.mxu0 0.0
        %2219 = vmatpush1.msra.mxu0 0.0
        %2220 = vmatprep.subr.mxu0 0.0
        %2221 = vmatpush1.msra.mxu0 0.0
        %2222 = vmatprep.subr.mxu0 0.0
        %2223 = vmatpush1.msra.mxu0 0.0
        %2224 = vmatprep.subr.mxu0 0.0
        %2225 = vmatpush1.msra.mxu0 0.0
        %2226 = vmatprep.subr.mxu0 0.0
        %2227 = vmatpush1.msra.mxu0 0.0
        %2228 = vmatprep.subr.mxu0 0.0
        %2229 = vmatpush1.msra.mxu0 0.0
        %2230 = vmatprep.subr.mxu0 0.0
        %2231 = vmatpush1.msra.mxu0 0.0
        %2232 = vmatprep.subr.mxu0 0.0
        %2233 = vmatpush1.msra.mxu0 0.0
        %2234 = vmatprep.subr.mxu0 0.0
        %2235 = vmatpush1.msra.mxu0 0.0
        %2236 = vmatprep.subr.mxu0 0.0
        %2237 = vmatpush1.msra.mxu0 0.0
        %2238 = vmatprep.subr.mxu0 0.0
        %2239 = vmatpush1.msra.mxu0 0.0
        %2240 = vmatprep.subr.mxu0 0.0
        %2241 = vmatpush1.msra.mxu0 0.0
        %2242 = vmatprep.subr.mxu0 0.0
        %2243 = vmatpush1.msra.mxu0 0.0
        %2244 = vmatprep.subr.mxu0 0.0
        %2245 = vmatpush1.msra.mxu0 0.0
        %2246 = vmatprep.subr.mxu0 0.0
        %2247 = vmatpush1.msra.mxu0 0.0
        %2248 = vmatprep.subr.mxu0 0.0
        %2249 = vmatpush1.msra.mxu0 0.0
        %2250 = vmatprep.subr.mxu0 0.0
        %2251 = vmatpush1.msra.mxu0 0.0
        %2252 = vmatprep.subr.mxu0 0.0
        %2253 = vmatpush1.msra.mxu0 0.0
        %2254 = vmatprep.subr.mxu0 0.0
        %2255 = vmatpush1.msra.mxu0 0.0
        %2256 = vmatprep.subr.mxu0 0.0
        %2257 = vmatpush1.msra.mxu0 0.0
        %2258 = vmatprep.mubr.f32.mxu0 0.0
        %2259 = vmatmul.mubr.f32.gmra.mrb[0].mxu0 %v2187
        %v2260 = vpop.f32.mrb[0].mxu0
        %v2261 = vadd.f32 %v2181, %v2260
        %v2262 = vpop.f32.mrb[0].mxu0
        %2263 = vmatprep.mubr.f32.mxu0 0.0
        %2264 = vmatmul.mubr.f32.gmra.mrb[0].mxu0 %v2190
        %v2265 = vpop.f32.mrb[0].mxu0
        %v2266 = vadd.f32 %v2181, %v2265
        %v2267 = vpop.f32.mrb[0].mxu0
        %2268 = vdwg.mxu0
        %v2269 = vmax.f32 %v2261, 0.0
        %v2270 = vmax.f32 %v2266, 0.0
        %v2271 = vlaneseq
        %v2272 = vshrl.u32 %v2271, 7
        %v2273 = vsub.s32 2, %v2272
        %v2274 = vrot.slane %v310, %v2273
        %v2275 = vmul.f32 %v2269, %v2274
        %v2276 = vmul.f32 %v2270, %v2274
        %vm2277 = vcmask 48128
        %v2278 = vsel %vm2277, %v2275, 0.0
        %2279 = vadd.xlane.f32.xlu0 %v2278
        %v2280 = vpop.xlane.xlu0 %2279
        %v2281 = vsel %vm2277, %v2276, 0.0
        %2282 = vadd.xlane.f32.xlu0 %v2281
        %v2283 = vpop.xlane.xlu0 %2282
        %v2285 = vrot.slane %v310, 3
        %s2286 = vtos %v2285
        %v2287 = vstv %s2286
        %v2289 = vadd.f32 %v2280, %v2287
        %v2290 = vadd.f32 %v2283, %v2287
        %v2293 = vlaneseq
        %v2294 = vshrl.u32 %v2293, 7
        %v2295 = vsub.s32 %v929, %v2294
        %v2296 = vrot.slane %v2289, %v2295
        %v2297 = vlaneseq
        %v2298 = vshrl.u32 %v2297, 7
        %v2299 = vsub.s32 %v929, %v2298
        %v2300 = vrot.slane %v2290, %v2299
        %v2301 = vsel %vm994, %v2300, %v2296
        %vm2303 = vcmask 58368
        %2304 = vst.msk [vmem:[%s289] sm:$0x3] %vm2303, %v2301
        %s2305 = sand.u32 %s151, 1
        %s2306 = scalar_lea.sflag [#allocation4], %s2305
        %s2307 = sand.u32 %s151, 1
        %s2308 = smul.addr %s2307, 2
        %s2309 = scalar_lea.vmem [#allocation7], %s2308
        // Predicated region
        $region49: #{critic_forward.1} parent=39 // pred_check
          %p2310 = pneg %p161
        $region50: #{critic_forward.1} parent=39 // pred_check_branch
          %2312 = sbr.rel (%p2310) target = $region52
        $region51: #{critic_forward.1} parent=39 // pred_region
          %s2314 = ssub.s32 32, 32
          %2315 = vsyncadd %s2306, %s2314
          %s2316 = smul.addr %s23, 32
          %s2317 = scalar_lea.hbm %s5, %s2316
          %s2319 = sshll.u32 %s2309, 4
          %s2320 = int_to_ptr.vmem [resolvable:$true] %s2319
          %2322 = dma.vmem_to_hbm [thread:$0]  %s2320, 32, %s2317, %s2306
        $region52: #{critic_forward.1} parent=39 // pred_fallthru
          _
      $region40: #{critic_forward.1} parent=5 // pred_fallthru
        _
      %p2323 = scmp.le.s32.totalorder 2, %s18
      // Predicated region
      $region53: #{critic_forward.1} parent=5 // pred_check
        %p2324 = pneg %p2323
      $region54: #{critic_forward.1} parent=5 // pred_check_branch
        %2326 = sbr.rel (%p2324) target = $region56
      $region55: #{critic_forward.1} parent=5 // pred_region
        %s2327 = ssub.s32 %s18, 2
        // Predicated region
        $region57: #{critic_forward.1} parent=55 // pred_check
          %p2328 = pneg %p167
        $region58: #{critic_forward.1} parent=55 // pred_check_branch
          %2330 = sbr.rel (%p2328) target = $region60
        $region59: #{critic_forward.1} parent=55 // pred_region
          %s2331 = sand.u32 %s152, 1
          %s2332 = scalar_lea.sflag [#allocation4], %s2331
          %s2333 = sand.u32 %s152, 1
          %s2334 = smul.addr %s2333, 2
          %s2335 = scalar_lea.vmem [#allocation7], %s2334
          %2336 = dma.done %s2332, 32
        $region60: #{critic_forward.1} parent=55 // pred_fallthru
          _
      $region56: #{critic_forward.1} parent=5 // pred_fallthru
        _
    $region6: #{critic_forward.1} parent=1 // loop_footer
      %s22 = sadd.s32 1, %s18
    $region7: #{critic_forward.1} parent=1 // loop_footer_branch
      %17 = sbr.rel target = $region3
    $region8: #{critic_forward.1} parent=1 // loop_exit
      _
    %2337 = vsyncpa [#allocation3], 1
    %s2338 = scalar_lea.sflag [#allocation3], 1
    %2339 = vsyncpa %s2338, 1
    %2340 = vsyncpa [#allocation6], 1
    %2341 = vsyncpa [#allocation4], 1
    %s2342 = scalar_lea.sflag [#allocation4], 1
    %2343 = vsyncpa %s2342, 1

</llo_original>
